<compile_context>
chip_gen: v7x
topology: tpu7x:2x2x1
jax: 0.10.0
libtpu: 0.0.40
codegen_flags: <defaults>
</compile_context>

<pallas_src>
import jax
import jax.numpy as jnp
import numpy as np
from jax import lax
from jax.experimental import pallas as pl
from jax.experimental.pallas import tpu as pltpu

INPUT_SIZE = 34
HIDDEN_SIZE = 64
OUTPUT_SIZE = 12
NUM_LAYERS = 2
_SUBLANE = 8


def _sigmoid(v):
    # sigmoid(x) == 0.5 * (1 + tanh(x / 2)): one EUP push instead of two
    # (exp + reciprocal) on the recurrent critical path. Mathematically exact.
    return 0.5 * jnp.tanh(0.5 * v) + 0.5


def _lstm_kernel(xflat_ref,   # (T*Bp, D)  time-major, batch-padded, flattened
                 wih1_ref,    # (D, 4H)    W_ih_l0^T
                 whh1_ref,    # (H, 4H)    W_hh_l0^T
                 b1_ref,      # (1, 4H)    b_ih_l0 + b_hh_l0
                 w2_ref,      # (2H, 4H)   [W_ih_l1^T ; W_hh_l1^T] stacked
                 b2_ref,      # (Bp, 4H)   pre-broadcast b_ih_l1 + b_hh_l1
                 wfc_ref,     # (H, O)     fc weight^T
                 bfc_ref,     # (1, O)     fc bias
                 out_ref,     # (Bp, O)
                 xp_ref):     # VMEM scratch (T, Bp, 4H): x @ W_ih_l0 + b1
    T, Bp, G = xp_ref.shape
    H = G // 4

    # ---- Hoisted layer-1 input projection: one MXU-filling matmul + bias ----
    proj = jnp.dot(xflat_ref[...], wih1_ref[...],
                   preferred_element_type=jnp.float32) + b1_ref[...]
    # Stage per-timestep slices into the (T, Bp, 4H) scratch (static, aligned:
    # Bp == 8 keeps every slice on full (8,128) tiles).
    for t in range(T):
        xp_ref[t] = proj[t * Bp:(t + 1) * Bp, :]

    # Hoist loop-invariant operands out of the recurrence.
    whh1 = whh1_ref[...]                                # (H, 4H)
    w2 = w2_ref[...]                                    # (2H, 4H)
    b2 = b2_ref[...]                                    # (Bp, 4H), pre-broadcast

    def gate_split(g):
        # PyTorch gate order: i, f, g, o (each H lanes of the 4H result).
        return (_sigmoid(g[:, 0:H]), _sigmoid(g[:, H:2 * H]),
                jnp.tanh(g[:, 2 * H:3 * H]), _sigmoid(g[:, 3 * H:4 * H]))

    def step(t, carry):
        h1, c1, h2, c2 = carry
        # ---- layer 1: only the recurrent term remains inside the loop ----
        g1 = xp_ref[t] + jnp.dot(h1, whh1,
                                 preferred_element_type=jnp.float32)
        i1, f1, gg1, o1 = gate_split(g1)
        c1n = f1 * c1 + i1 * gg1
        h1n = o1 * jnp.tanh(c1n)
        # ---- layer 2: single fused dot, contraction dim = 2H = 128 ----
        s2 = jnp.concatenate([h1n, h2], axis=1)         # [h1_t | h2_{t-1}]
        g2 = jnp.dot(s2, w2, preferred_element_type=jnp.float32) + b2
        i2, f2, gg2, o2 = gate_split(g2)
        c2n = f2 * c2 + i2 * gg2
        h2n = o2 * jnp.tanh(c2n)
        return h1n, c1n, h2n, c2n

    z = jnp.zeros((Bp, H), jnp.float32)                 # h0 = c0 = 0
    _, _, h2_fin, _ = lax.fori_loop(0, T, step, (z, z, z, z), unroll=True)

    # fc on the top layer's final hidden state.
    out_ref[...] = (jnp.dot(h2_fin, wfc_ref[...],
                            preferred_element_type=jnp.float32)
                    + bfc_ref[...]).astype(out_ref.dtype)


def lstm_action_recognition(x, params):
    """x: (B, T, INPUT_SIZE) float32, batch_first like the PyTorch module."""
    B, T, D = x.shape
    H, O = HIDDEN_SIZE, OUTPUT_SIZE
    Bp = ((B + _SUBLANE - 1) // _SUBLANE) * _SUBLANE    # pad batch to 8 sublanes

    # Layout plumbing only (no hoisted compute): time-major, batch-padded,
    # flattened input so the kernel can do one big input-projection matmul.
    x_tm = jnp.transpose(x, (1, 0, 2))                            # (T, B, D)
    x_tm = jnp.pad(x_tm, ((0, 0), (0, Bp - B), (0, 0)))           # (T, Bp, D)
    x_flat = x_tm.reshape(T * Bp, D).astype(jnp.float32)

    # Pre-transposed / stacked weights, "input-major x gate" layout (i,f,g,o).
    wih1 = params["w_ih_l0"].T                                    # (D, 4H)
    whh1 = params["w_hh_l0"].T                                    # (H, 4H)
    b1 = (params["b_ih_l0"] + params["b_hh_l0"]).reshape(1, 4 * H)
    w2 = jnp.concatenate([params["w_ih_l1"].T,
                          params["w_hh_l1"].T], axis=0)           # (2H, 4H)
    b2 = jnp.broadcast_to(
        (params["b_ih_l1"] + params["b_hh_l1"]).reshape(1, 4 * H), (Bp, 4 * H))
    wfc = params["fc_w"].T                                        # (H, O)
    bfc = params["fc_b"].reshape(1, O)

    vmem = pl.BlockSpec(memory_space=pltpu.MemorySpace.VMEM)
    out_padded = pl.pallas_call(
        _lstm_kernel,
        out_shape=jax.ShapeDtypeStruct((Bp, O), jnp.float32),
        in_specs=[vmem] * 8,
        out_specs=vmem,
        scratch_shapes=[pltpu.VMEM((T, Bp, 4 * H), jnp.float32)],  # xp
    )(x_flat, wih1, whh1, b1, w2, b2, wfc, bfc)
    return out_padded[:B]


def init_params(key):
    """Deterministic init matching PyTorch LSTM parameter shapes."""
    H, D, O = HIDDEN_SIZE, INPUT_SIZE, OUTPUT_SIZE
    k = 1.0 / np.sqrt(H)
    keys = jax.random.split(key, 10)
    u = lambda kk, shape: jax.random.uniform(kk, shape, jnp.float32, -k, k)
    return {
        "w_ih_l0": u(keys[0], (4 * H, D)),
        "w_hh_l0": u(keys[1], (4 * H, H)),
        "b_ih_l0": u(keys[2], (4 * H,)),
        "b_hh_l0": u(keys[3], (4 * H,)),
        "w_ih_l1": u(keys[4], (4 * H, H)),
        "w_hh_l1": u(keys[5], (4 * H, H)),
        "b_ih_l1": u(keys[6], (4 * H,)),
        "b_hh_l1": u(keys[7], (4 * H,)),
        "fc_w":    u(keys[8], (O, H)),
        "fc_b":    u(keys[9], (O,)),
    }


def reference_forward(x, params):
    """Pure-JAX reference mirroring torch.nn.LSTM (gate order i,f,g,o) + Linear."""
    H = HIDDEN_SIZE
    B = x.shape[0]

    def cell(x_t, h, c, w_ih, w_hh, b_ih, b_hh):
        gates = x_t @ w_ih.T + h @ w_hh.T + b_ih + b_hh
        i = jax.nn.sigmoid(gates[:, 0:H])
        f = jax.nn.sigmoid(gates[:, H:2 * H])
        g = jnp.tanh(gates[:, 2 * H:3 * H])
        o = jax.nn.sigmoid(gates[:, 3 * H:4 * H])
        c_new = f * c + i * g
        return o * jnp.tanh(c_new), c_new

    def step(carry, x_t):
        h1, c1, h2, c2 = carry
        h1, c1 = cell(x_t, h1, c1, params["w_ih_l0"], params["w_hh_l0"],
                      params["b_ih_l0"], params["b_hh_l0"])
        h2, c2 = cell(h1, h2, c2, params["w_ih_l1"], params["w_hh_l1"],
                      params["b_ih_l1"], params["b_hh_l1"])
        return (h1, c1, h2, c2), None

    zeros = jnp.zeros((B, H), jnp.float32)
    (h1, c1, h2, c2), _ = lax.scan(step, (zeros, zeros, zeros, zeros),
                                   jnp.transpose(x, (1, 0, 2)))
    return h2 @ params["fc_w"].T + params["fc_b"]


if __name__ == "__main__":
    key = jax.random.PRNGKey(0)
    k_param, k_x = jax.random.split(key)

    B, T = 2, 8
    x = jax.random.normal(k_x, (B, T, INPUT_SIZE), jnp.float32)
    params = init_params(k_param)

    out = lstm_action_recognition(x, params)
    out = jax.block_until_ready(out)

    ref = reference_forward(x, params)
    np.testing.assert_allclose(np.asarray(out), np.asarray(ref), rtol=1e-4, atol=1e-4)

    assert out.shape == (B, OUTPUT_SIZE)
    print("KERNEL_OK")
</pallas_src>

<mosaic_0001>
module attributes {stable_mosaic.version = 11 : i64} {
  func.func @_lstm_kernel(%arg0: memref<64x34xf32, #tpu.memory_space<vmem>>, %arg1: memref<34x256xf32, #tpu.memory_space<vmem>>, %arg2: memref<64x256xf32, #tpu.memory_space<vmem>>, %arg3: memref<1x256xf32, #tpu.memory_space<vmem>>, %arg4: memref<128x256xf32, #tpu.memory_space<vmem>>, %arg5: memref<8x256xf32, #tpu.memory_space<vmem>>, %arg6: memref<64x12xf32, #tpu.memory_space<vmem>>, %arg7: memref<1x12xf32, #tpu.memory_space<vmem>>, %arg8: memref<8x12xf32, #tpu.memory_space<vmem>>, %arg9: memref<8x8x256xf32, #tpu.memory_space<vmem>>) attributes {dimension_semantics = [], scalar_prefetch = 0 : i64, scratch_operands = 1 : i64, tpu.core_type = #tpu.core_type<tc>} {
    %c0 = arith.constant 0 : index
    %c0_0 = arith.constant 0 : index
    %0 = vector.load %arg0[%c0, %c0_0] : memref<64x34xf32, #tpu.memory_space<vmem>>, vector<64x34xf32>
    %c0_1 = arith.constant 0 : index
    %c0_2 = arith.constant 0 : index
    %1 = vector.load %arg1[%c0_1, %c0_2] : memref<34x256xf32, #tpu.memory_space<vmem>>, vector<34x256xf32>
    %cst = arith.constant dense<0.000000e+00> : vector<64x256xf32>
    %2 = tpu.matmul %0, %1, %cst {dimension_numbers = #tpu.dot_dimension_numbers<[1], [0], [0], [1], [0, 0, 1, 1], [], []>} : vector<64x34xf32>, vector<34x256xf32>, vector<64x256xf32> -> vector<64x256xf32>
    %c0_3 = arith.constant 0 : index
    %c0_4 = arith.constant 0 : index
    %3 = vector.load %arg3[%c0_3, %c0_4] : memref<1x256xf32, #tpu.memory_space<vmem>>, vector<1x256xf32>
    %4 = vector.broadcast %3 : vector<1x256xf32> to vector<64x256xf32>
    %5 = arith.addf %2, %4 : vector<64x256xf32>
    %6 = vector.extract_strided_slice %5 {offsets = [0, 0], sizes = [8, 256], strides = [1, 1]} : vector<64x256xf32> to vector<8x256xf32>
    %c0_5 = arith.constant 0 : index
    %c0_6 = arith.constant 0 : index
    %c0_7 = arith.constant 0 : index
    %7 = vector.load %arg9[%c0_5, %c0_6, %c0_7] : memref<8x8x256xf32, #tpu.memory_space<vmem>>, vector<1x8x256xf32>
    %8 = vector.shape_cast %7 : vector<1x8x256xf32> to vector<8x256xf32>
    %9 = vector.shape_cast %6 : vector<8x256xf32> to vector<1x8x256xf32>
    tpu.vector_store %arg9[%c0_5, %c0_6, %c0_7], %9 {strides = array<i32>} : memref<8x8x256xf32, #tpu.memory_space<vmem>>, vector<1x8x256xf32>,
    %10 = vector.extract_strided_slice %5 {offsets = [8, 0], sizes = [8, 256], strides = [1, 1]} : vector<64x256xf32> to vector<8x256xf32>
    %c1 = arith.constant 1 : index
    %c0_8 = arith.constant 0 : index
    %c0_9 = arith.constant 0 : index
    %11 = vector.load %arg9[%c1, %c0_8, %c0_9] : memref<8x8x256xf32, #tpu.memory_space<vmem>>, vector<1x8x256xf32>
    %12 = vector.shape_cast %11 : vector<1x8x256xf32> to vector<8x256xf32>
    %13 = vector.shape_cast %10 : vector<8x256xf32> to vector<1x8x256xf32>
    tpu.vector_store %arg9[%c1, %c0_8, %c0_9], %13 {strides = array<i32>} : memref<8x8x256xf32, #tpu.memory_space<vmem>>, vector<1x8x256xf32>,
    %14 = vector.extract_strided_slice %5 {offsets = [16, 0], sizes = [8, 256], strides = [1, 1]} : vector<64x256xf32> to vector<8x256xf32>
    %c2 = arith.constant 2 : index
    %c0_10 = arith.constant 0 : index
    %c0_11 = arith.constant 0 : index
    %15 = vector.load %arg9[%c2, %c0_10, %c0_11] : memref<8x8x256xf32, #tpu.memory_space<vmem>>, vector<1x8x256xf32>
    %16 = vector.shape_cast %15 : vector<1x8x256xf32> to vector<8x256xf32>
    %17 = vector.shape_cast %14 : vector<8x256xf32> to vector<1x8x256xf32>
    tpu.vector_store %arg9[%c2, %c0_10, %c0_11], %17 {strides = array<i32>} : memref<8x8x256xf32, #tpu.memory_space<vmem>>, vector<1x8x256xf32>,
    %18 = vector.extract_strided_slice %5 {offsets = [24, 0], sizes = [8, 256], strides = [1, 1]} : vector<64x256xf32> to vector<8x256xf32>
    %c3 = arith.constant 3 : index
    %c0_12 = arith.constant 0 : index
    %c0_13 = arith.constant 0 : index
    %19 = vector.load %arg9[%c3, %c0_12, %c0_13] : memref<8x8x256xf32, #tpu.memory_space<vmem>>, vector<1x8x256xf32>
    %20 = vector.shape_cast %19 : vector<1x8x256xf32> to vector<8x256xf32>
    %21 = vector.shape_cast %18 : vector<8x256xf32> to vector<1x8x256xf32>
    tpu.vector_store %arg9[%c3, %c0_12, %c0_13], %21 {strides = array<i32>} : memref<8x8x256xf32, #tpu.memory_space<vmem>>, vector<1x8x256xf32>,
    %22 = vector.extract_strided_slice %5 {offsets = [32, 0], sizes = [8, 256], strides = [1, 1]} : vector<64x256xf32> to vector<8x256xf32>
    %c4 = arith.constant 4 : index
    %c0_14 = arith.constant 0 : index
    %c0_15 = arith.constant 0 : index
    %23 = vector.load %arg9[%c4, %c0_14, %c0_15] : memref<8x8x256xf32, #tpu.memory_space<vmem>>, vector<1x8x256xf32>
    %24 = vector.shape_cast %23 : vector<1x8x256xf32> to vector<8x256xf32>
    %25 = vector.shape_cast %22 : vector<8x256xf32> to vector<1x8x256xf32>
    tpu.vector_store %arg9[%c4, %c0_14, %c0_15], %25 {strides = array<i32>} : memref<8x8x256xf32, #tpu.memory_space<vmem>>, vector<1x8x256xf32>,
    %26 = vector.extract_strided_slice %5 {offsets = [40, 0], sizes = [8, 256], strides = [1, 1]} : vector<64x256xf32> to vector<8x256xf32>
    %c5 = arith.constant 5 : index
    %c0_16 = arith.constant 0 : index
    %c0_17 = arith.constant 0 : index
    %27 = vector.load %arg9[%c5, %c0_16, %c0_17] : memref<8x8x256xf32, #tpu.memory_space<vmem>>, vector<1x8x256xf32>
    %28 = vector.shape_cast %27 : vector<1x8x256xf32> to vector<8x256xf32>
    %29 = vector.shape_cast %26 : vector<8x256xf32> to vector<1x8x256xf32>
    tpu.vector_store %arg9[%c5, %c0_16, %c0_17], %29 {strides = array<i32>} : memref<8x8x256xf32, #tpu.memory_space<vmem>>, vector<1x8x256xf32>,
    %30 = vector.extract_strided_slice %5 {offsets = [48, 0], sizes = [8, 256], strides = [1, 1]} : vector<64x256xf32> to vector<8x256xf32>
    %c6 = arith.constant 6 : index
    %c0_18 = arith.constant 0 : index
    %c0_19 = arith.constant 0 : index
    %31 = vector.load %arg9[%c6, %c0_18, %c0_19] : memref<8x8x256xf32, #tpu.memory_space<vmem>>, vector<1x8x256xf32>
    %32 = vector.shape_cast %31 : vector<1x8x256xf32> to vector<8x256xf32>
    %33 = vector.shape_cast %30 : vector<8x256xf32> to vector<1x8x256xf32>
    tpu.vector_store %arg9[%c6, %c0_18, %c0_19], %33 {strides = array<i32>} : memref<8x8x256xf32, #tpu.memory_space<vmem>>, vector<1x8x256xf32>,
    %34 = vector.extract_strided_slice %5 {offsets = [56, 0], sizes = [8, 256], strides = [1, 1]} : vector<64x256xf32> to vector<8x256xf32>
    %c7 = arith.constant 7 : index
    %c0_20 = arith.constant 0 : index
    %c0_21 = arith.constant 0 : index
    %35 = vector.load %arg9[%c7, %c0_20, %c0_21] : memref<8x8x256xf32, #tpu.memory_space<vmem>>, vector<1x8x256xf32>
    %36 = vector.shape_cast %35 : vector<1x8x256xf32> to vector<8x256xf32>
    %37 = vector.shape_cast %34 : vector<8x256xf32> to vector<1x8x256xf32>
    tpu.vector_store %arg9[%c7, %c0_20, %c0_21], %37 {strides = array<i32>} : memref<8x8x256xf32, #tpu.memory_space<vmem>>, vector<1x8x256xf32>,
    %c0_22 = arith.constant 0 : index
    %c0_23 = arith.constant 0 : index
    %38 = vector.load %arg2[%c0_22, %c0_23] : memref<64x256xf32, #tpu.memory_space<vmem>>, vector<64x256xf32>
    %c0_24 = arith.constant 0 : index
    %c0_25 = arith.constant 0 : index
    %39 = vector.load %arg4[%c0_24, %c0_25] : memref<128x256xf32, #tpu.memory_space<vmem>>, vector<128x256xf32>
    %c0_26 = arith.constant 0 : index
    %c0_27 = arith.constant 0 : index
    %40 = vector.load %arg5[%c0_26, %c0_27] : memref<8x256xf32, #tpu.memory_space<vmem>>, vector<8x256xf32>
    %cst_28 = arith.constant 0.000000e+00 : f32
    %41 = vector.broadcast %cst_28 : f32 to vector<8x64xf32>
    %c0_i32 = arith.constant 0 : i32
    %42 = arith.index_cast %c0_i32 : i32 to index
    %c0_29 = arith.constant 0 : index
    %c0_30 = arith.constant 0 : index
    %43 = vector.load %arg9[%42, %c0_29, %c0_30] : memref<8x8x256xf32, #tpu.memory_space<vmem>>, vector<1x8x256xf32>
    %44 = vector.shape_cast %43 : vector<1x8x256xf32> to vector<8x256xf32>
    %cst_31 = arith.constant dense<0.000000e+00> : vector<8x256xf32>
    %45 = tpu.matmul %41, %38, %cst_31 {dimension_numbers = #tpu.dot_dimension_numbers<[1], [0], [0], [1], [0, 0, 1, 1], [], []>} : vector<8x64xf32>, vector<64x256xf32>, vector<8x256xf32> -> vector<8x256xf32>
    %46 = arith.addf %44, %45 : vector<8x256xf32>
    %47 = vector.extract_strided_slice %46 {offsets = [0, 0], sizes = [8, 64], strides = [1, 1]} : vector<8x256xf32> to vector<8x64xf32>
    %cst_32 = arith.constant 5.000000e-01 : f32
    %48 = vector.broadcast %cst_32 : f32 to vector<8x64xf32>
    %49 = arith.mulf %48, %47 : vector<8x64xf32>
    %50 = math.tanh %49 : vector<8x64xf32>
    %cst_33 = arith.constant 5.000000e-01 : f32
    %51 = vector.broadcast %cst_33 : f32 to vector<8x64xf32>
    %52 = arith.mulf %51, %50 : vector<8x64xf32>
    %cst_34 = arith.constant 5.000000e-01 : f32
    %53 = vector.broadcast %cst_34 : f32 to vector<8x64xf32>
    %54 = arith.addf %52, %53 : vector<8x64xf32>
    %55 = vector.extract_strided_slice %46 {offsets = [0, 64], sizes = [8, 64], strides = [1, 1]} : vector<8x256xf32> to vector<8x64xf32>
    %cst_35 = arith.constant 5.000000e-01 : f32
    %56 = vector.broadcast %cst_35 : f32 to vector<8x64xf32>
    %57 = arith.mulf %56, %55 : vector<8x64xf32>
    %58 = math.tanh %57 : vector<8x64xf32>
    %cst_36 = arith.constant 5.000000e-01 : f32
    %59 = vector.broadcast %cst_36 : f32 to vector<8x64xf32>
    %60 = arith.mulf %59, %58 : vector<8x64xf32>
    %cst_37 = arith.constant 5.000000e-01 : f32
    %61 = vector.broadcast %cst_37 : f32 to vector<8x64xf32>
    %62 = arith.addf %60, %61 : vector<8x64xf32>
    %63 = vector.extract_strided_slice %46 {offsets = [0, 128], sizes = [8, 64], strides = [1, 1]} : vector<8x256xf32> to vector<8x64xf32>
    %64 = math.tanh %63 : vector<8x64xf32>
    %65 = vector.extract_strided_slice %46 {offsets = [0, 192], sizes = [8, 64], strides = [1, 1]} : vector<8x256xf32> to vector<8x64xf32>
    %cst_38 = arith.constant 5.000000e-01 : f32
    %66 = vector.broadcast %cst_38 : f32 to vector<8x64xf32>
    %67 = arith.mulf %66, %65 : vector<8x64xf32>
    %68 = math.tanh %67 : vector<8x64xf32>
    %cst_39 = arith.constant 5.000000e-01 : f32
    %69 = vector.broadcast %cst_39 : f32 to vector<8x64xf32>
    %70 = arith.mulf %69, %68 : vector<8x64xf32>
    %cst_40 = arith.constant 5.000000e-01 : f32
    %71 = vector.broadcast %cst_40 : f32 to vector<8x64xf32>
    %72 = arith.addf %70, %71 : vector<8x64xf32>
    %73 = arith.mulf %62, %41 : vector<8x64xf32>
    %74 = arith.mulf %54, %64 : vector<8x64xf32>
    %75 = arith.addf %73, %74 : vector<8x64xf32>
    %76 = math.tanh %75 : vector<8x64xf32>
    %77 = arith.mulf %72, %76 : vector<8x64xf32>
    %78 = tpu.concatenate %77, %41 in 1 : vector<8x64xf32>, vector<8x64xf32> -> vector<8x128xf32>
    %cst_41 = arith.constant dense<0.000000e+00> : vector<8x256xf32>
    %79 = tpu.matmul %78, %39, %cst_41 {dimension_numbers = #tpu.dot_dimension_numbers<[1], [0], [0], [1], [0, 0, 1, 1], [], []>} : vector<8x128xf32>, vector<128x256xf32>, vector<8x256xf32> -> vector<8x256xf32>
    %80 = arith.addf %79, %40 : vector<8x256xf32>
    %81 = vector.extract_strided_slice %80 {offsets = [0, 0], sizes = [8, 64], strides = [1, 1]} : vector<8x256xf32> to vector<8x64xf32>
    %cst_42 = arith.constant 5.000000e-01 : f32
    %82 = vector.broadcast %cst_42 : f32 to vector<8x64xf32>
    %83 = arith.mulf %82, %81 : vector<8x64xf32>
    %84 = math.tanh %83 : vector<8x64xf32>
    %cst_43 = arith.constant 5.000000e-01 : f32
    %85 = vector.broadcast %cst_43 : f32 to vector<8x64xf32>
    %86 = arith.mulf %85, %84 : vector<8x64xf32>
    %cst_44 = arith.constant 5.000000e-01 : f32
    %87 = vector.broadcast %cst_44 : f32 to vector<8x64xf32>
    %88 = arith.addf %86, %87 : vector<8x64xf32>
    %89 = vector.extract_strided_slice %80 {offsets = [0, 64], sizes = [8, 64], strides = [1, 1]} : vector<8x256xf32> to vector<8x64xf32>
    %cst_45 = arith.constant 5.000000e-01 : f32
    %90 = vector.broadcast %cst_45 : f32 to vector<8x64xf32>
    %91 = arith.mulf %90, %89 : vector<8x64xf32>
    %92 = math.tanh %91 : vector<8x64xf32>
    %cst_46 = arith.constant 5.000000e-01 : f32
    %93 = vector.broadcast %cst_46 : f32 to vector<8x64xf32>
    %94 = arith.mulf %93, %92 : vector<8x64xf32>
    %cst_47 = arith.constant 5.000000e-01 : f32
    %95 = vector.broadcast %cst_47 : f32 to vector<8x64xf32>
    %96 = arith.addf %94, %95 : vector<8x64xf32>
    %97 = vector.extract_strided_slice %80 {offsets = [0, 128], sizes = [8, 64], strides = [1, 1]} : vector<8x256xf32> to vector<8x64xf32>
    %98 = math.tanh %97 : vector<8x64xf32>
    %99 = vector.extract_strided_slice %80 {offsets = [0, 192], sizes = [8, 64], strides = [1, 1]} : vector<8x256xf32> to vector<8x64xf32>
    %cst_48 = arith.constant 5.000000e-01 : f32
    %100 = vector.broadcast %cst_48 : f32 to vector<8x64xf32>
    %101 = arith.mulf %100, %99 : vector<8x64xf32>
    %102 = math.tanh %101 : vector<8x64xf32>
    %cst_49 = arith.constant 5.000000e-01 : f32
    %103 = vector.broadcast %cst_49 : f32 to vector<8x64xf32>
    %104 = arith.mulf %103, %102 : vector<8x64xf32>
    %cst_50 = arith.constant 5.000000e-01 : f32
    %105 = vector.broadcast %cst_50 : f32 to vector<8x64xf32>
    %106 = arith.addf %104, %105 : vector<8x64xf32>
    %107 = arith.mulf %96, %41 : vector<8x64xf32>
    %108 = arith.mulf %88, %98 : vector<8x64xf32>
    %109 = arith.addf %107, %108 : vector<8x64xf32>
    %110 = math.tanh %109 : vector<8x64xf32>
    %111 = arith.mulf %106, %110 : vector<8x64xf32>
    %c1_i32 = arith.constant 1 : i32
    %112 = arith.index_cast %c1_i32 : i32 to index
    %c0_51 = arith.constant 0 : index
    %c0_52 = arith.constant 0 : index
    %113 = vector.load %arg9[%112, %c0_51, %c0_52] : memref<8x8x256xf32, #tpu.memory_space<vmem>>, vector<1x8x256xf32>
    %114 = vector.shape_cast %113 : vector<1x8x256xf32> to vector<8x256xf32>
    %cst_53 = arith.constant dense<0.000000e+00> : vector<8x256xf32>
    %115 = tpu.matmul %77, %38, %cst_53 {dimension_numbers = #tpu.dot_dimension_numbers<[1], [0], [0], [1], [0, 0, 1, 1], [], []>} : vector<8x64xf32>, vector<64x256xf32>, vector<8x256xf32> -> vector<8x256xf32>
    %116 = arith.addf %114, %115 : vector<8x256xf32>
    %117 = vector.extract_strided_slice %116 {offsets = [0, 0], sizes = [8, 64], strides = [1, 1]} : vector<8x256xf32> to vector<8x64xf32>
    %cst_54 = arith.constant 5.000000e-01 : f32
    %118 = vector.broadcast %cst_54 : f32 to vector<8x64xf32>
    %119 = arith.mulf %118, %117 : vector<8x64xf32>
    %120 = math.tanh %119 : vector<8x64xf32>
    %cst_55 = arith.constant 5.000000e-01 : f32
    %121 = vector.broadcast %cst_55 : f32 to vector<8x64xf32>
    %122 = arith.mulf %121, %120 : vector<8x64xf32>
    %cst_56 = arith.constant 5.000000e-01 : f32
    %123 = vector.broadcast %cst_56 : f32 to vector<8x64xf32>
    %124 = arith.addf %122, %123 : vector<8x64xf32>
    %125 = vector.extract_strided_slice %116 {offsets = [0, 64], sizes = [8, 64], strides = [1, 1]} : vector<8x256xf32> to vector<8x64xf32>
    %cst_57 = arith.constant 5.000000e-01 : f32
    %126 = vector.broadcast %cst_57 : f32 to vector<8x64xf32>
    %127 = arith.mulf %126, %125 : vector<8x64xf32>
    %128 = math.tanh %127 : vector<8x64xf32>
    %cst_58 = arith.constant 5.000000e-01 : f32
    %129 = vector.broadcast %cst_58 : f32 to vector<8x64xf32>
    %130 = arith.mulf %129, %128 : vector<8x64xf32>
    %cst_59 = arith.constant 5.000000e-01 : f32
    %131 = vector.broadcast %cst_59 : f32 to vector<8x64xf32>
    %132 = arith.addf %130, %131 : vector<8x64xf32>
    %133 = vector.extract_strided_slice %116 {offsets = [0, 128], sizes = [8, 64], strides = [1, 1]} : vector<8x256xf32> to vector<8x64xf32>
    %134 = math.tanh %133 : vector<8x64xf32>
    %135 = vector.extract_strided_slice %116 {offsets = [0, 192], sizes = [8, 64], strides = [1, 1]} : vector<8x256xf32> to vector<8x64xf32>
    %cst_60 = arith.constant 5.000000e-01 : f32
    %136 = vector.broadcast %cst_60 : f32 to vector<8x64xf32>
    %137 = arith.mulf %136, %135 : vector<8x64xf32>
    %138 = math.tanh %137 : vector<8x64xf32>
    %cst_61 = arith.constant 5.000000e-01 : f32
    %139 = vector.broadcast %cst_61 : f32 to vector<8x64xf32>
    %140 = arith.mulf %139, %138 : vector<8x64xf32>
    %cst_62 = arith.constant 5.000000e-01 : f32
    %141 = vector.broadcast %cst_62 : f32 to vector<8x64xf32>
    %142 = arith.addf %140, %141 : vector<8x64xf32>
    %143 = arith.mulf %132, %75 : vector<8x64xf32>
    %144 = arith.mulf %124, %134 : vector<8x64xf32>
    %145 = arith.addf %143, %144 : vector<8x64xf32>
    %146 = math.tanh %145 : vector<8x64xf32>
    %147 = arith.mulf %142, %146 : vector<8x64xf32>
    %148 = tpu.concatenate %147, %111 in 1 : vector<8x64xf32>, vector<8x64xf32> -> vector<8x128xf32>
    %cst_63 = arith.constant dense<0.000000e+00> : vector<8x256xf32>
    %149 = tpu.matmul %148, %39, %cst_63 {dimension_numbers = #tpu.dot_dimension_numbers<[1], [0], [0], [1], [0, 0, 1, 1], [], []>} : vector<8x128xf32>, vector<128x256xf32>, vector<8x256xf32> -> vector<8x256xf32>
    %150 = arith.addf %149, %40 : vector<8x256xf32>
    %151 = vector.extract_strided_slice %150 {offsets = [0, 0], sizes = [8, 64], strides = [1, 1]} : vector<8x256xf32> to vector<8x64xf32>
    %cst_64 = arith.constant 5.000000e-01 : f32
    %152 = vector.broadcast %cst_64 : f32 to vector<8x64xf32>
    %153 = arith.mulf %152, %151 : vector<8x64xf32>
    %154 = math.tanh %153 : vector<8x64xf32>
    %cst_65 = arith.constant 5.000000e-01 : f32
    %155 = vector.broadcast %cst_65 : f32 to vector<8x64xf32>
    %156 = arith.mulf %155, %154 : vector<8x64xf32>
    %cst_66 = arith.constant 5.000000e-01 : f32
    %157 = vector.broadcast %cst_66 : f32 to vector<8x64xf32>
    %158 = arith.addf %156, %157 : vector<8x64xf32>
    %159 = vector.extract_strided_slice %150 {offsets = [0, 64], sizes = [8, 64], strides = [1, 1]} : vector<8x256xf32> to vector<8x64xf32>
    %cst_67 = arith.constant 5.000000e-01 : f32
    %160 = vector.broadcast %cst_67 : f32 to vector<8x64xf32>
    %161 = arith.mulf %160, %159 : vector<8x64xf32>
    %162 = math.tanh %161 : vector<8x64xf32>
    %cst_68 = arith.constant 5.000000e-01 : f32
    %163 = vector.broadcast %cst_68 : f32 to vector<8x64xf32>
    %164 = arith.mulf %163, %162 : vector<8x64xf32>
    %cst_69 = arith.constant 5.000000e-01 : f32
    %165 = vector.broadcast %cst_69 : f32 to vector<8x64xf32>
    %166 = arith.addf %164, %165 : vector<8x64xf32>
    %167 = vector.extract_strided_slice %150 {offsets = [0, 128], sizes = [8, 64], strides = [1, 1]} : vector<8x256xf32> to vector<8x64xf32>
    %168 = math.tanh %167 : vector<8x64xf32>
    %169 = vector.extract_strided_slice %150 {offsets = [0, 192], sizes = [8, 64], strides = [1, 1]} : vector<8x256xf32> to vector<8x64xf32>
    %cst_70 = arith.constant 5.000000e-01 : f32
    %170 = vector.broadcast %cst_70 : f32 to vector<8x64xf32>
    %171 = arith.mulf %170, %169 : vector<8x64xf32>
    %172 = math.tanh %171 : vector<8x64xf32>
    %cst_71 = arith.constant 5.000000e-01 : f32
    %173 = vector.broadcast %cst_71 : f32 to vector<8x64xf32>
    %174 = arith.mulf %173, %172 : vector<8x64xf32>
    %cst_72 = arith.constant 5.000000e-01 : f32
    %175 = vector.broadcast %cst_72 : f32 to vector<8x64xf32>
    %176 = arith.addf %174, %175 : vector<8x64xf32>
    %177 = arith.mulf %166, %109 : vector<8x64xf32>
    %178 = arith.mulf %158, %168 : vector<8x64xf32>
    %179 = arith.addf %177, %178 : vector<8x64xf32>
    %180 = math.tanh %179 : vector<8x64xf32>
    %181 = arith.mulf %176, %180 : vector<8x64xf32>
    %c2_i32 = arith.constant 2 : i32
    %182 = arith.index_cast %c2_i32 : i32 to index
    %c0_73 = arith.constant 0 : index
    %c0_74 = arith.constant 0 : index
    %183 = vector.load %arg9[%182, %c0_73, %c0_74] : memref<8x8x256xf32, #tpu.memory_space<vmem>>, vector<1x8x256xf32>
    %184 = vector.shape_cast %183 : vector<1x8x256xf32> to vector<8x256xf32>
    %cst_75 = arith.constant dense<0.000000e+00> : vector<8x256xf32>
    %185 = tpu.matmul %147, %38, %cst_75 {dimension_numbers = #tpu.dot_dimension_numbers<[1], [0], [0], [1], [0, 0, 1, 1], [], []>} : vector<8x64xf32>, vector<64x256xf32>, vector<8x256xf32> -> vector<8x256xf32>
    %186 = arith.addf %184, %185 : vector<8x256xf32>
    %187 = vector.extract_strided_slice %186 {offsets = [0, 0], sizes = [8, 64], strides = [1, 1]} : vector<8x256xf32> to vector<8x64xf32>
    %cst_76 = arith.constant 5.000000e-01 : f32
    %188 = vector.broadcast %cst_76 : f32 to vector<8x64xf32>
    %189 = arith.mulf %188, %187 : vector<8x64xf32>
    %190 = math.tanh %189 : vector<8x64xf32>
    %cst_77 = arith.constant 5.000000e-01 : f32
    %191 = vector.broadcast %cst_77 : f32 to vector<8x64xf32>
    %192 = arith.mulf %191, %190 : vector<8x64xf32>
    %cst_78 = arith.constant 5.000000e-01 : f32
    %193 = vector.broadcast %cst_78 : f32 to vector<8x64xf32>
    %194 = arith.addf %192, %193 : vector<8x64xf32>
    %195 = vector.extract_strided_slice %186 {offsets = [0, 64], sizes = [8, 64], strides = [1, 1]} : vector<8x256xf32> to vector<8x64xf32>
    %cst_79 = arith.constant 5.000000e-01 : f32
    %196 = vector.broadcast %cst_79 : f32 to vector<8x64xf32>
    %197 = arith.mulf %196, %195 : vector<8x64xf32>
    %198 = math.tanh %197 : vector<8x64xf32>
    %cst_80 = arith.constant 5.000000e-01 : f32
    %199 = vector.broadcast %cst_80 : f32 to vector<8x64xf32>
    %200 = arith.mulf %199, %198 : vector<8x64xf32>
    %cst_81 = arith.constant 5.000000e-01 : f32
    %201 = vector.broadcast %cst_81 : f32 to vector<8x64xf32>
    %202 = arith.addf %200, %201 : vector<8x64xf32>
    %203 = vector.extract_strided_slice %186 {offsets = [0, 128], sizes = [8, 64], strides = [1, 1]} : vector<8x256xf32> to vector<8x64xf32>
    %204 = math.tanh %203 : vector<8x64xf32>
    %205 = vector.extract_strided_slice %186 {offsets = [0, 192], sizes = [8, 64], strides = [1, 1]} : vector<8x256xf32> to vector<8x64xf32>
    %cst_82 = arith.constant 5.000000e-01 : f32
    %206 = vector.broadcast %cst_82 : f32 to vector<8x64xf32>
    %207 = arith.mulf %206, %205 : vector<8x64xf32>
    %208 = math.tanh %207 : vector<8x64xf32>
    %cst_83 = arith.constant 5.000000e-01 : f32
    %209 = vector.broadcast %cst_83 : f32 to vector<8x64xf32>
    %210 = arith.mulf %209, %208 : vector<8x64xf32>
    %cst_84 = arith.constant 5.000000e-01 : f32
    %211 = vector.broadcast %cst_84 : f32 to vector<8x64xf32>
    %212 = arith.addf %210, %211 : vector<8x64xf32>
    %213 = arith.mulf %202, %145 : vector<8x64xf32>
    %214 = arith.mulf %194, %204 : vector<8x64xf32>
    %215 = arith.addf %213, %214 : vector<8x64xf32>
    %216 = math.tanh %215 : vector<8x64xf32>
    %217 = arith.mulf %212, %216 : vector<8x64xf32>
    %218 = tpu.concatenate %217, %181 in 1 : vector<8x64xf32>, vector<8x64xf32> -> vector<8x128xf32>
    %cst_85 = arith.constant dense<0.000000e+00> : vector<8x256xf32>
    %219 = tpu.matmul %218, %39, %cst_85 {dimension_numbers = #tpu.dot_dimension_numbers<[1], [0], [0], [1], [0, 0, 1, 1], [], []>} : vector<8x128xf32>, vector<128x256xf32>, vector<8x256xf32> -> vector<8x256xf32>
    %220 = arith.addf %219, %40 : vector<8x256xf32>
    %221 = vector.extract_strided_slice %220 {offsets = [0, 0], sizes = [8, 64], strides = [1, 1]} : vector<8x256xf32> to vector<8x64xf32>
    %cst_86 = arith.constant 5.000000e-01 : f32
    %222 = vector.broadcast %cst_86 : f32 to vector<8x64xf32>
    %223 = arith.mulf %222, %221 : vector<8x64xf32>
    %224 = math.tanh %223 : vector<8x64xf32>
    %cst_87 = arith.constant 5.000000e-01 : f32
    %225 = vector.broadcast %cst_87 : f32 to vector<8x64xf32>
    %226 = arith.mulf %225, %224 : vector<8x64xf32>
    %cst_88 = arith.constant 5.000000e-01 : f32
    %227 = vector.broadcast %cst_88 : f32 to vector<8x64xf32>
    %228 = arith.addf %226, %227 : vector<8x64xf32>
    %229 = vector.extract_strided_slice %220 {offsets = [0, 64], sizes = [8, 64], strides = [1, 1]} : vector<8x256xf32> to vector<8x64xf32>
    %cst_89 = arith.constant 5.000000e-01 : f32
    %230 = vector.broadcast %cst_89 : f32 to vector<8x64xf32>
    %231 = arith.mulf %230, %229 : vector<8x64xf32>
    %232 = math.tanh %231 : vector<8x64xf32>
    %cst_90 = arith.constant 5.000000e-01 : f32
    %233 = vector.broadcast %cst_90 : f32 to vector<8x64xf32>
    %234 = arith.mulf %233, %232 : vector<8x64xf32>
    %cst_91 = arith.constant 5.000000e-01 : f32
    %235 = vector.broadcast %cst_91 : f32 to vector<8x64xf32>
    %236 = arith.addf %234, %235 : vector<8x64xf32>
    %237 = vector.extract_strided_slice %220 {offsets = [0, 128], sizes = [8, 64], strides = [1, 1]} : vector<8x256xf32> to vector<8x64xf32>
    %238 = math.tanh %237 : vector<8x64xf32>
    %239 = vector.extract_strided_slice %220 {offsets = [0, 192], sizes = [8, 64], strides = [1, 1]} : vector<8x256xf32> to vector<8x64xf32>
    %cst_92 = arith.constant 5.000000e-01 : f32
    %240 = vector.broadcast %cst_92 : f32 to vector<8x64xf32>
    %241 = arith.mulf %240, %239 : vector<8x64xf32>
    %242 = math.tanh %241 : vector<8x64xf32>
    %cst_93 = arith.constant 5.000000e-01 : f32
    %243 = vector.broadcast %cst_93 : f32 to vector<8x64xf32>
    %244 = arith.mulf %243, %242 : vector<8x64xf32>
    %cst_94 = arith.constant 5.000000e-01 : f32
    %245 = vector.broadcast %cst_94 : f32 to vector<8x64xf32>
    %246 = arith.addf %244, %245 : vector<8x64xf32>
    %247 = arith.mulf %236, %179 : vector<8x64xf32>
    %248 = arith.mulf %228, %238 : vector<8x64xf32>
    %249 = arith.addf %247, %248 : vector<8x64xf32>
    %250 = math.tanh %249 : vector<8x64xf32>
    %251 = arith.mulf %246, %250 : vector<8x64xf32>
    %c3_i32 = arith.constant 3 : i32
    %252 = arith.index_cast %c3_i32 : i32 to index
    %c0_95 = arith.constant 0 : index
    %c0_96 = arith.constant 0 : index
    %253 = vector.load %arg9[%252, %c0_95, %c0_96] : memref<8x8x256xf32, #tpu.memory_space<vmem>>, vector<1x8x256xf32>
    %254 = vector.shape_cast %253 : vector<1x8x256xf32> to vector<8x256xf32>
    %cst_97 = arith.constant dense<0.000000e+00> : vector<8x256xf32>
    %255 = tpu.matmul %217, %38, %cst_97 {dimension_numbers = #tpu.dot_dimension_numbers<[1], [0], [0], [1], [0, 0, 1, 1], [], []>} : vector<8x64xf32>, vector<64x256xf32>, vector<8x256xf32> -> vector<8x256xf32>
    %256 = arith.addf %254, %255 : vector<8x256xf32>
    %257 = vector.extract_strided_slice %256 {offsets = [0, 0], sizes = [8, 64], strides = [1, 1]} : vector<8x256xf32> to vector<8x64xf32>
    %cst_98 = arith.constant 5.000000e-01 : f32
    %258 = vector.broadcast %cst_98 : f32 to vector<8x64xf32>
    %259 = arith.mulf %258, %257 : vector<8x64xf32>
    %260 = math.tanh %259 : vector<8x64xf32>
    %cst_99 = arith.constant 5.000000e-01 : f32
    %261 = vector.broadcast %cst_99 : f32 to vector<8x64xf32>
    %262 = arith.mulf %261, %260 : vector<8x64xf32>
    %cst_100 = arith.constant 5.000000e-01 : f32
    %263 = vector.broadcast %cst_100 : f32 to vector<8x64xf32>
    %264 = arith.addf %262, %263 : vector<8x64xf32>
    %265 = vector.extract_strided_slice %256 {offsets = [0, 64], sizes = [8, 64], strides = [1, 1]} : vector<8x256xf32> to vector<8x64xf32>
    %cst_101 = arith.constant 5.000000e-01 : f32
    %266 = vector.broadcast %cst_101 : f32 to vector<8x64xf32>
    %267 = arith.mulf %266, %265 : vector<8x64xf32>
    %268 = math.tanh %267 : vector<8x64xf32>
    %cst_102 = arith.constant 5.000000e-01 : f32
    %269 = vector.broadcast %cst_102 : f32 to vector<8x64xf32>
    %270 = arith.mulf %269, %268 : vector<8x64xf32>
    %cst_103 = arith.constant 5.000000e-01 : f32
    %271 = vector.broadcast %cst_103 : f32 to vector<8x64xf32>
    %272 = arith.addf %270, %271 : vector<8x64xf32>
    %273 = vector.extract_strided_slice %256 {offsets = [0, 128], sizes = [8, 64], strides = [1, 1]} : vector<8x256xf32> to vector<8x64xf32>
    %274 = math.tanh %273 : vector<8x64xf32>
    %275 = vector.extract_strided_slice %256 {offsets = [0, 192], sizes = [8, 64], strides = [1, 1]} : vector<8x256xf32> to vector<8x64xf32>
    %cst_104 = arith.constant 5.000000e-01 : f32
    %276 = vector.broadcast %cst_104 : f32 to vector<8x64xf32>
    %277 = arith.mulf %276, %275 : vector<8x64xf32>
    %278 = math.tanh %277 : vector<8x64xf32>
    %cst_105 = arith.constant 5.000000e-01 : f32
    %279 = vector.broadcast %cst_105 : f32 to vector<8x64xf32>
    %280 = arith.mulf %279, %278 : vector<8x64xf32>
    %cst_106 = arith.constant 5.000000e-01 : f32
    %281 = vector.broadcast %cst_106 : f32 to vector<8x64xf32>
    %282 = arith.addf %280, %281 : vector<8x64xf32>
    %283 = arith.mulf %272, %215 : vector<8x64xf32>
    %284 = arith.mulf %264, %274 : vector<8x64xf32>
    %285 = arith.addf %283, %284 : vector<8x64xf32>
    %286 = math.tanh %285 : vector<8x64xf32>
    %287 = arith.mulf %282, %286 : vector<8x64xf32>
    %288 = tpu.concatenate %287, %251 in 1 : vector<8x64xf32>, vector<8x64xf32> -> vector<8x128xf32>
    %cst_107 = arith.constant dense<0.000000e+00> : vector<8x256xf32>
    %289 = tpu.matmul %288, %39, %cst_107 {dimension_numbers = #tpu.dot_dimension_numbers<[1], [0], [0], [1], [0, 0, 1, 1], [], []>} : vector<8x128xf32>, vector<128x256xf32>, vector<8x256xf32> -> vector<8x256xf32>
    %290 = arith.addf %289, %40 : vector<8x256xf32>
    %291 = vector.extract_strided_slice %290 {offsets = [0, 0], sizes = [8, 64], strides = [1, 1]} : vector<8x256xf32> to vector<8x64xf32>
    %cst_108 = arith.constant 5.000000e-01 : f32
    %292 = vector.broadcast %cst_108 : f32 to vector<8x64xf32>
    %293 = arith.mulf %292, %291 : vector<8x64xf32>
    %294 = math.tanh %293 : vector<8x64xf32>
    %cst_109 = arith.constant 5.000000e-01 : f32
    %295 = vector.broadcast %cst_109 : f32 to vector<8x64xf32>
    %296 = arith.mulf %295, %294 : vector<8x64xf32>
    %cst_110 = arith.constant 5.000000e-01 : f32
    %297 = vector.broadcast %cst_110 : f32 to vector<8x64xf32>
    %298 = arith.addf %296, %297 : vector<8x64xf32>
    %299 = vector.extract_strided_slice %290 {offsets = [0, 64], sizes = [8, 64], strides = [1, 1]} : vector<8x256xf32> to vector<8x64xf32>
    %cst_111 = arith.constant 5.000000e-01 : f32
    %300 = vector.broadcast %cst_111 : f32 to vector<8x64xf32>
    %301 = arith.mulf %300, %299 : vector<8x64xf32>
    %302 = math.tanh %301 : vector<8x64xf32>
    %cst_112 = arith.constant 5.000000e-01 : f32
    %303 = vector.broadcast %cst_112 : f32 to vector<8x64xf32>
    %304 = arith.mulf %303, %302 : vector<8x64xf32>
    %cst_113 = arith.constant 5.000000e-01 : f32
    %305 = vector.broadcast %cst_113 : f32 to vector<8x64xf32>
    %306 = arith.addf %304, %305 : vector<8x64xf32>
    %307 = vector.extract_strided_slice %290 {offsets = [0, 128], sizes = [8, 64], strides = [1, 1]} : vector<8x256xf32> to vector<8x64xf32>
    %308 = math.tanh %307 : vector<8x64xf32>
    %309 = vector.extract_strided_slice %290 {offsets = [0, 192], sizes = [8, 64], strides = [1, 1]} : vector<8x256xf32> to vector<8x64xf32>
    %cst_114 = arith.constant 5.000000e-01 : f32
    %310 = vector.broadcast %cst_114 : f32 to vector<8x64xf32>
    %311 = arith.mulf %310, %309 : vector<8x64xf32>
    %312 = math.tanh %311 : vector<8x64xf32>
    %cst_115 = arith.constant 5.000000e-01 : f32
    %313 = vector.broadcast %cst_115 : f32 to vector<8x64xf32>
    %314 = arith.mulf %313, %312 : vector<8x64xf32>
    %cst_116 = arith.constant 5.000000e-01 : f32
    %315 = vector.broadcast %cst_116 : f32 to vector<8x64xf32>
    %316 = arith.addf %314, %315 : vector<8x64xf32>
    %317 = arith.mulf %306, %249 : vector<8x64xf32>
    %318 = arith.mulf %298, %308 : vector<8x64xf32>
    %319 = arith.addf %317, %318 : vector<8x64xf32>
    %320 = math.tanh %319 : vector<8x64xf32>
    %321 = arith.mulf %316, %320 : vector<8x64xf32>
    %c4_i32 = arith.constant 4 : i32
    %322 = arith.index_cast %c4_i32 : i32 to index
    %c0_117 = arith.constant 0 : index
    %c0_118 = arith.constant 0 : index
    %323 = vector.load %arg9[%322, %c0_117, %c0_118] : memref<8x8x256xf32, #tpu.memory_space<vmem>>, vector<1x8x256xf32>
    %324 = vector.shape_cast %323 : vector<1x8x256xf32> to vector<8x256xf32>
    %cst_119 = arith.constant dense<0.000000e+00> : vector<8x256xf32>
    %325 = tpu.matmul %287, %38, %cst_119 {dimension_numbers = #tpu.dot_dimension_numbers<[1], [0], [0], [1], [0, 0, 1, 1], [], []>} : vector<8x64xf32>, vector<64x256xf32>, vector<8x256xf32> -> vector<8x256xf32>
    %326 = arith.addf %324, %325 : vector<8x256xf32>
    %327 = vector.extract_strided_slice %326 {offsets = [0, 0], sizes = [8, 64], strides = [1, 1]} : vector<8x256xf32> to vector<8x64xf32>
    %cst_120 = arith.constant 5.000000e-01 : f32
    %328 = vector.broadcast %cst_120 : f32 to vector<8x64xf32>
    %329 = arith.mulf %328, %327 : vector<8x64xf32>
    %330 = math.tanh %329 : vector<8x64xf32>
    %cst_121 = arith.constant 5.000000e-01 : f32
    %331 = vector.broadcast %cst_121 : f32 to vector<8x64xf32>
    %332 = arith.mulf %331, %330 : vector<8x64xf32>
    %cst_122 = arith.constant 5.000000e-01 : f32
    %333 = vector.broadcast %cst_122 : f32 to vector<8x64xf32>
    %334 = arith.addf %332, %333 : vector<8x64xf32>
    %335 = vector.extract_strided_slice %326 {offsets = [0, 64], sizes = [8, 64], strides = [1, 1]} : vector<8x256xf32> to vector<8x64xf32>
    %cst_123 = arith.constant 5.000000e-01 : f32
    %336 = vector.broadcast %cst_123 : f32 to vector<8x64xf32>
    %337 = arith.mulf %336, %335 : vector<8x64xf32>
    %338 = math.tanh %337 : vector<8x64xf32>
    %cst_124 = arith.constant 5.000000e-01 : f32
    %339 = vector.broadcast %cst_124 : f32 to vector<8x64xf32>
    %340 = arith.mulf %339, %338 : vector<8x64xf32>
    %cst_125 = arith.constant 5.000000e-01 : f32
    %341 = vector.broadcast %cst_125 : f32 to vector<8x64xf32>
    %342 = arith.addf %340, %341 : vector<8x64xf32>
    %343 = vector.extract_strided_slice %326 {offsets = [0, 128], sizes = [8, 64], strides = [1, 1]} : vector<8x256xf32> to vector<8x64xf32>
    %344 = math.tanh %343 : vector<8x64xf32>
    %345 = vector.extract_strided_slice %326 {offsets = [0, 192], sizes = [8, 64], strides = [1, 1]} : vector<8x256xf32> to vector<8x64xf32>
    %cst_126 = arith.constant 5.000000e-01 : f32
    %346 = vector.broadcast %cst_126 : f32 to vector<8x64xf32>
    %347 = arith.mulf %346, %345 : vector<8x64xf32>
    %348 = math.tanh %347 : vector<8x64xf32>
    %cst_127 = arith.constant 5.000000e-01 : f32
    %349 = vector.broadcast %cst_127 : f32 to vector<8x64xf32>
    %350 = arith.mulf %349, %348 : vector<8x64xf32>
    %cst_128 = arith.constant 5.000000e-01 : f32
    %351 = vector.broadcast %cst_128 : f32 to vector<8x64xf32>
    %352 = arith.addf %350, %351 : vector<8x64xf32>
    %353 = arith.mulf %342, %285 : vector<8x64xf32>
    %354 = arith.mulf %334, %344 : vector<8x64xf32>
    %355 = arith.addf %353, %354 : vector<8x64xf32>
    %356 = math.tanh %355 : vector<8x64xf32>
    %357 = arith.mulf %352, %356 : vector<8x64xf32>
    %358 = tpu.concatenate %357, %321 in 1 : vector<8x64xf32>, vector<8x64xf32> -> vector<8x128xf32>
    %cst_129 = arith.constant dense<0.000000e+00> : vector<8x256xf32>
    %359 = tpu.matmul %358, %39, %cst_129 {dimension_numbers = #tpu.dot_dimension_numbers<[1], [0], [0], [1], [0, 0, 1, 1], [], []>} : vector<8x128xf32>, vector<128x256xf32>, vector<8x256xf32> -> vector<8x256xf32>
    %360 = arith.addf %359, %40 : vector<8x256xf32>
    %361 = vector.extract_strided_slice %360 {offsets = [0, 0], sizes = [8, 64], strides = [1, 1]} : vector<8x256xf32> to vector<8x64xf32>
    %cst_130 = arith.constant 5.000000e-01 : f32
    %362 = vector.broadcast %cst_130 : f32 to vector<8x64xf32>
    %363 = arith.mulf %362, %361 : vector<8x64xf32>
    %364 = math.tanh %363 : vector<8x64xf32>
    %cst_131 = arith.constant 5.000000e-01 : f32
    %365 = vector.broadcast %cst_131 : f32 to vector<8x64xf32>
    %366 = arith.mulf %365, %364 : vector<8x64xf32>
    %cst_132 = arith.constant 5.000000e-01 : f32
    %367 = vector.broadcast %cst_132 : f32 to vector<8x64xf32>
    %368 = arith.addf %366, %367 : vector<8x64xf32>
    %369 = vector.extract_strided_slice %360 {offsets = [0, 64], sizes = [8, 64], strides = [1, 1]} : vector<8x256xf32> to vector<8x64xf32>
    %cst_133 = arith.constant 5.000000e-01 : f32
    %370 = vector.broadcast %cst_133 : f32 to vector<8x64xf32>
    %371 = arith.mulf %370, %369 : vector<8x64xf32>
    %372 = math.tanh %371 : vector<8x64xf32>
    %cst_134 = arith.constant 5.000000e-01 : f32
    %373 = vector.broadcast %cst_134 : f32 to vector<8x64xf32>
    %374 = arith.mulf %373, %372 : vector<8x64xf32>
    %cst_135 = arith.constant 5.000000e-01 : f32
    %375 = vector.broadcast %cst_135 : f32 to vector<8x64xf32>
    %376 = arith.addf %374, %375 : vector<8x64xf32>
    %377 = vector.extract_strided_slice %360 {offsets = [0, 128], sizes = [8, 64], strides = [1, 1]} : vector<8x256xf32> to vector<8x64xf32>
    %378 = math.tanh %377 : vector<8x64xf32>
    %379 = vector.extract_strided_slice %360 {offsets = [0, 192], sizes = [8, 64], strides = [1, 1]} : vector<8x256xf32> to vector<8x64xf32>
    %cst_136 = arith.constant 5.000000e-01 : f32
    %380 = vector.broadcast %cst_136 : f32 to vector<8x64xf32>
    %381 = arith.mulf %380, %379 : vector<8x64xf32>
    %382 = math.tanh %381 : vector<8x64xf32>
    %cst_137 = arith.constant 5.000000e-01 : f32
    %383 = vector.broadcast %cst_137 : f32 to vector<8x64xf32>
    %384 = arith.mulf %383, %382 : vector<8x64xf32>
    %cst_138 = arith.constant 5.000000e-01 : f32
    %385 = vector.broadcast %cst_138 : f32 to vector<8x64xf32>
    %386 = arith.addf %384, %385 : vector<8x64xf32>
    %387 = arith.mulf %376, %319 : vector<8x64xf32>
    %388 = arith.mulf %368, %378 : vector<8x64xf32>
    %389 = arith.addf %387, %388 : vector<8x64xf32>
    %390 = math.tanh %389 : vector<8x64xf32>
    %391 = arith.mulf %386, %390 : vector<8x64xf32>
    %c5_i32 = arith.constant 5 : i32
    %392 = arith.index_cast %c5_i32 : i32 to index
    %c0_139 = arith.constant 0 : index
    %c0_140 = arith.constant 0 : index
    %393 = vector.load %arg9[%392, %c0_139, %c0_140] : memref<8x8x256xf32, #tpu.memory_space<vmem>>, vector<1x8x256xf32>
    %394 = vector.shape_cast %393 : vector<1x8x256xf32> to vector<8x256xf32>
    %cst_141 = arith.constant dense<0.000000e+00> : vector<8x256xf32>
    %395 = tpu.matmul %357, %38, %cst_141 {dimension_numbers = #tpu.dot_dimension_numbers<[1], [0], [0], [1], [0, 0, 1, 1], [], []>} : vector<8x64xf32>, vector<64x256xf32>, vector<8x256xf32> -> vector<8x256xf32>
    %396 = arith.addf %394, %395 : vector<8x256xf32>
    %397 = vector.extract_strided_slice %396 {offsets = [0, 0], sizes = [8, 64], strides = [1, 1]} : vector<8x256xf32> to vector<8x64xf32>
    %cst_142 = arith.constant 5.000000e-01 : f32
    %398 = vector.broadcast %cst_142 : f32 to vector<8x64xf32>
    %399 = arith.mulf %398, %397 : vector<8x64xf32>
    %400 = math.tanh %399 : vector<8x64xf32>
    %cst_143 = arith.constant 5.000000e-01 : f32
    %401 = vector.broadcast %cst_143 : f32 to vector<8x64xf32>
    %402 = arith.mulf %401, %400 : vector<8x64xf32>
    %cst_144 = arith.constant 5.000000e-01 : f32
    %403 = vector.broadcast %cst_144 : f32 to vector<8x64xf32>
    %404 = arith.addf %402, %403 : vector<8x64xf32>
    %405 = vector.extract_strided_slice %396 {offsets = [0, 64], sizes = [8, 64], strides = [1, 1]} : vector<8x256xf32> to vector<8x64xf32>
    %cst_145 = arith.constant 5.000000e-01 : f32
    %406 = vector.broadcast %cst_145 : f32 to vector<8x64xf32>
    %407 = arith.mulf %406, %405 : vector<8x64xf32>
    %408 = math.tanh %407 : vector<8x64xf32>
    %cst_146 = arith.constant 5.000000e-01 : f32
    %409 = vector.broadcast %cst_146 : f32 to vector<8x64xf32>
    %410 = arith.mulf %409, %408 : vector<8x64xf32>
    %cst_147 = arith.constant 5.000000e-01 : f32
    %411 = vector.broadcast %cst_147 : f32 to vector<8x64xf32>
    %412 = arith.addf %410, %411 : vector<8x64xf32>
    %413 = vector.extract_strided_slice %396 {offsets = [0, 128], sizes = [8, 64], strides = [1, 1]} : vector<8x256xf32> to vector<8x64xf32>
    %414 = math.tanh %413 : vector<8x64xf32>
    %415 = vector.extract_strided_slice %396 {offsets = [0, 192], sizes = [8, 64], strides = [1, 1]} : vector<8x256xf32> to vector<8x64xf32>
    %cst_148 = arith.constant 5.000000e-01 : f32
    %416 = vector.broadcast %cst_148 : f32 to vector<8x64xf32>
    %417 = arith.mulf %416, %415 : vector<8x64xf32>
    %418 = math.tanh %417 : vector<8x64xf32>
    %cst_149 = arith.constant 5.000000e-01 : f32
    %419 = vector.broadcast %cst_149 : f32 to vector<8x64xf32>
    %420 = arith.mulf %419, %418 : vector<8x64xf32>
    %cst_150 = arith.constant 5.000000e-01 : f32
    %421 = vector.broadcast %cst_150 : f32 to vector<8x64xf32>
    %422 = arith.addf %420, %421 : vector<8x64xf32>
    %423 = arith.mulf %412, %355 : vector<8x64xf32>
    %424 = arith.mulf %404, %414 : vector<8x64xf32>
    %425 = arith.addf %423, %424 : vector<8x64xf32>
    %426 = math.tanh %425 : vector<8x64xf32>
    %427 = arith.mulf %422, %426 : vector<8x64xf32>
    %428 = tpu.concatenate %427, %391 in 1 : vector<8x64xf32>, vector<8x64xf32> -> vector<8x128xf32>
    %cst_151 = arith.constant dense<0.000000e+00> : vector<8x256xf32>
    %429 = tpu.matmul %428, %39, %cst_151 {dimension_numbers = #tpu.dot_dimension_numbers<[1], [0], [0], [1], [0, 0, 1, 1], [], []>} : vector<8x128xf32>, vector<128x256xf32>, vector<8x256xf32> -> vector<8x256xf32>
    %430 = arith.addf %429, %40 : vector<8x256xf32>
    %431 = vector.extract_strided_slice %430 {offsets = [0, 0], sizes = [8, 64], strides = [1, 1]} : vector<8x256xf32> to vector<8x64xf32>
    %cst_152 = arith.constant 5.000000e-01 : f32
    %432 = vector.broadcast %cst_152 : f32 to vector<8x64xf32>
    %433 = arith.mulf %432, %431 : vector<8x64xf32>
    %434 = math.tanh %433 : vector<8x64xf32>
    %cst_153 = arith.constant 5.000000e-01 : f32
    %435 = vector.broadcast %cst_153 : f32 to vector<8x64xf32>
    %436 = arith.mulf %435, %434 : vector<8x64xf32>
    %cst_154 = arith.constant 5.000000e-01 : f32
    %437 = vector.broadcast %cst_154 : f32 to vector<8x64xf32>
    %438 = arith.addf %436, %437 : vector<8x64xf32>
    %439 = vector.extract_strided_slice %430 {offsets = [0, 64], sizes = [8, 64], strides = [1, 1]} : vector<8x256xf32> to vector<8x64xf32>
    %cst_155 = arith.constant 5.000000e-01 : f32
    %440 = vector.broadcast %cst_155 : f32 to vector<8x64xf32>
    %441 = arith.mulf %440, %439 : vector<8x64xf32>
    %442 = math.tanh %441 : vector<8x64xf32>
    %cst_156 = arith.constant 5.000000e-01 : f32
    %443 = vector.broadcast %cst_156 : f32 to vector<8x64xf32>
    %444 = arith.mulf %443, %442 : vector<8x64xf32>
    %cst_157 = arith.constant 5.000000e-01 : f32
    %445 = vector.broadcast %cst_157 : f32 to vector<8x64xf32>
    %446 = arith.addf %444, %445 : vector<8x64xf32>
    %447 = vector.extract_strided_slice %430 {offsets = [0, 128], sizes = [8, 64], strides = [1, 1]} : vector<8x256xf32> to vector<8x64xf32>
    %448 = math.tanh %447 : vector<8x64xf32>
    %449 = vector.extract_strided_slice %430 {offsets = [0, 192], sizes = [8, 64], strides = [1, 1]} : vector<8x256xf32> to vector<8x64xf32>
    %cst_158 = arith.constant 5.000000e-01 : f32
    %450 = vector.broadcast %cst_158 : f32 to vector<8x64xf32>
    %451 = arith.mulf %450, %449 : vector<8x64xf32>
    %452 = math.tanh %451 : vector<8x64xf32>
    %cst_159 = arith.constant 5.000000e-01 : f32
    %453 = vector.broadcast %cst_159 : f32 to vector<8x64xf32>
    %454 = arith.mulf %453, %452 : vector<8x64xf32>
    %cst_160 = arith.constant 5.000000e-01 : f32
    %455 = vector.broadcast %cst_160 : f32 to vector<8x64xf32>
    %456 = arith.addf %454, %455 : vector<8x64xf32>
    %457 = arith.mulf %446, %389 : vector<8x64xf32>
    %458 = arith.mulf %438, %448 : vector<8x64xf32>
    %459 = arith.addf %457, %458 : vector<8x64xf32>
    %460 = math.tanh %459 : vector<8x64xf32>
    %461 = arith.mulf %456, %460 : vector<8x64xf32>
    %c6_i32 = arith.constant 6 : i32
    %462 = arith.index_cast %c6_i32 : i32 to index
    %c0_161 = arith.constant 0 : index
    %c0_162 = arith.constant 0 : index
    %463 = vector.load %arg9[%462, %c0_161, %c0_162] : memref<8x8x256xf32, #tpu.memory_space<vmem>>, vector<1x8x256xf32>
    %464 = vector.shape_cast %463 : vector<1x8x256xf32> to vector<8x256xf32>
    %cst_163 = arith.constant dense<0.000000e+00> : vector<8x256xf32>
    %465 = tpu.matmul %427, %38, %cst_163 {dimension_numbers = #tpu.dot_dimension_numbers<[1], [0], [0], [1], [0, 0, 1, 1], [], []>} : vector<8x64xf32>, vector<64x256xf32>, vector<8x256xf32> -> vector<8x256xf32>
    %466 = arith.addf %464, %465 : vector<8x256xf32>
    %467 = vector.extract_strided_slice %466 {offsets = [0, 0], sizes = [8, 64], strides = [1, 1]} : vector<8x256xf32> to vector<8x64xf32>
    %cst_164 = arith.constant 5.000000e-01 : f32
    %468 = vector.broadcast %cst_164 : f32 to vector<8x64xf32>
    %469 = arith.mulf %468, %467 : vector<8x64xf32>
    %470 = math.tanh %469 : vector<8x64xf32>
    %cst_165 = arith.constant 5.000000e-01 : f32
    %471 = vector.broadcast %cst_165 : f32 to vector<8x64xf32>
    %472 = arith.mulf %471, %470 : vector<8x64xf32>
    %cst_166 = arith.constant 5.000000e-01 : f32
    %473 = vector.broadcast %cst_166 : f32 to vector<8x64xf32>
    %474 = arith.addf %472, %473 : vector<8x64xf32>
    %475 = vector.extract_strided_slice %466 {offsets = [0, 64], sizes = [8, 64], strides = [1, 1]} : vector<8x256xf32> to vector<8x64xf32>
    %cst_167 = arith.constant 5.000000e-01 : f32
    %476 = vector.broadcast %cst_167 : f32 to vector<8x64xf32>
    %477 = arith.mulf %476, %475 : vector<8x64xf32>
    %478 = math.tanh %477 : vector<8x64xf32>
    %cst_168 = arith.constant 5.000000e-01 : f32
    %479 = vector.broadcast %cst_168 : f32 to vector<8x64xf32>
    %480 = arith.mulf %479, %478 : vector<8x64xf32>
    %cst_169 = arith.constant 5.000000e-01 : f32
    %481 = vector.broadcast %cst_169 : f32 to vector<8x64xf32>
    %482 = arith.addf %480, %481 : vector<8x64xf32>
    %483 = vector.extract_strided_slice %466 {offsets = [0, 128], sizes = [8, 64], strides = [1, 1]} : vector<8x256xf32> to vector<8x64xf32>
    %484 = math.tanh %483 : vector<8x64xf32>
    %485 = vector.extract_strided_slice %466 {offsets = [0, 192], sizes = [8, 64], strides = [1, 1]} : vector<8x256xf32> to vector<8x64xf32>
    %cst_170 = arith.constant 5.000000e-01 : f32
    %486 = vector.broadcast %cst_170 : f32 to vector<8x64xf32>
    %487 = arith.mulf %486, %485 : vector<8x64xf32>
    %488 = math.tanh %487 : vector<8x64xf32>
    %cst_171 = arith.constant 5.000000e-01 : f32
    %489 = vector.broadcast %cst_171 : f32 to vector<8x64xf32>
    %490 = arith.mulf %489, %488 : vector<8x64xf32>
    %cst_172 = arith.constant 5.000000e-01 : f32
    %491 = vector.broadcast %cst_172 : f32 to vector<8x64xf32>
    %492 = arith.addf %490, %491 : vector<8x64xf32>
    %493 = arith.mulf %482, %425 : vector<8x64xf32>
    %494 = arith.mulf %474, %484 : vector<8x64xf32>
    %495 = arith.addf %493, %494 : vector<8x64xf32>
    %496 = math.tanh %495 : vector<8x64xf32>
    %497 = arith.mulf %492, %496 : vector<8x64xf32>
    %498 = tpu.concatenate %497, %461 in 1 : vector<8x64xf32>, vector<8x64xf32> -> vector<8x128xf32>
    %cst_173 = arith.constant dense<0.000000e+00> : vector<8x256xf32>
    %499 = tpu.matmul %498, %39, %cst_173 {dimension_numbers = #tpu.dot_dimension_numbers<[1], [0], [0], [1], [0, 0, 1, 1], [], []>} : vector<8x128xf32>, vector<128x256xf32>, vector<8x256xf32> -> vector<8x256xf32>
    %500 = arith.addf %499, %40 : vector<8x256xf32>
    %501 = vector.extract_strided_slice %500 {offsets = [0, 0], sizes = [8, 64], strides = [1, 1]} : vector<8x256xf32> to vector<8x64xf32>
    %cst_174 = arith.constant 5.000000e-01 : f32
    %502 = vector.broadcast %cst_174 : f32 to vector<8x64xf32>
    %503 = arith.mulf %502, %501 : vector<8x64xf32>
    %504 = math.tanh %503 : vector<8x64xf32>
    %cst_175 = arith.constant 5.000000e-01 : f32
    %505 = vector.broadcast %cst_175 : f32 to vector<8x64xf32>
    %506 = arith.mulf %505, %504 : vector<8x64xf32>
    %cst_176 = arith.constant 5.000000e-01 : f32
    %507 = vector.broadcast %cst_176 : f32 to vector<8x64xf32>
    %508 = arith.addf %506, %507 : vector<8x64xf32>
    %509 = vector.extract_strided_slice %500 {offsets = [0, 64], sizes = [8, 64], strides = [1, 1]} : vector<8x256xf32> to vector<8x64xf32>
    %cst_177 = arith.constant 5.000000e-01 : f32
    %510 = vector.broadcast %cst_177 : f32 to vector<8x64xf32>
    %511 = arith.mulf %510, %509 : vector<8x64xf32>
    %512 = math.tanh %511 : vector<8x64xf32>
    %cst_178 = arith.constant 5.000000e-01 : f32
    %513 = vector.broadcast %cst_178 : f32 to vector<8x64xf32>
    %514 = arith.mulf %513, %512 : vector<8x64xf32>
    %cst_179 = arith.constant 5.000000e-01 : f32
    %515 = vector.broadcast %cst_179 : f32 to vector<8x64xf32>
    %516 = arith.addf %514, %515 : vector<8x64xf32>
    %517 = vector.extract_strided_slice %500 {offsets = [0, 128], sizes = [8, 64], strides = [1, 1]} : vector<8x256xf32> to vector<8x64xf32>
    %518 = math.tanh %517 : vector<8x64xf32>
    %519 = vector.extract_strided_slice %500 {offsets = [0, 192], sizes = [8, 64], strides = [1, 1]} : vector<8x256xf32> to vector<8x64xf32>
    %cst_180 = arith.constant 5.000000e-01 : f32
    %520 = vector.broadcast %cst_180 : f32 to vector<8x64xf32>
    %521 = arith.mulf %520, %519 : vector<8x64xf32>
    %522 = math.tanh %521 : vector<8x64xf32>
    %cst_181 = arith.constant 5.000000e-01 : f32
    %523 = vector.broadcast %cst_181 : f32 to vector<8x64xf32>
    %524 = arith.mulf %523, %522 : vector<8x64xf32>
    %cst_182 = arith.constant 5.000000e-01 : f32
    %525 = vector.broadcast %cst_182 : f32 to vector<8x64xf32>
    %526 = arith.addf %524, %525 : vector<8x64xf32>
    %527 = arith.mulf %516, %459 : vector<8x64xf32>
    %528 = arith.mulf %508, %518 : vector<8x64xf32>
    %529 = arith.addf %527, %528 : vector<8x64xf32>
    %530 = math.tanh %529 : vector<8x64xf32>
    %531 = arith.mulf %526, %530 : vector<8x64xf32>
    %c7_i32 = arith.constant 7 : i32
    %532 = arith.index_cast %c7_i32 : i32 to index
    %c0_183 = arith.constant 0 : index
    %c0_184 = arith.constant 0 : index
    %533 = vector.load %arg9[%532, %c0_183, %c0_184] : memref<8x8x256xf32, #tpu.memory_space<vmem>>, vector<1x8x256xf32>
    %534 = vector.shape_cast %533 : vector<1x8x256xf32> to vector<8x256xf32>
    %cst_185 = arith.constant dense<0.000000e+00> : vector<8x256xf32>
    %535 = tpu.matmul %497, %38, %cst_185 {dimension_numbers = #tpu.dot_dimension_numbers<[1], [0], [0], [1], [0, 0, 1, 1], [], []>} : vector<8x64xf32>, vector<64x256xf32>, vector<8x256xf32> -> vector<8x256xf32>
    %536 = arith.addf %534, %535 : vector<8x256xf32>
    %537 = vector.extract_strided_slice %536 {offsets = [0, 0], sizes = [8, 64], strides = [1, 1]} : vector<8x256xf32> to vector<8x64xf32>
    %cst_186 = arith.constant 5.000000e-01 : f32
    %538 = vector.broadcast %cst_186 : f32 to vector<8x64xf32>
    %539 = arith.mulf %538, %537 : vector<8x64xf32>
    %540 = math.tanh %539 : vector<8x64xf32>
    %cst_187 = arith.constant 5.000000e-01 : f32
    %541 = vector.broadcast %cst_187 : f32 to vector<8x64xf32>
    %542 = arith.mulf %541, %540 : vector<8x64xf32>
    %cst_188 = arith.constant 5.000000e-01 : f32
    %543 = vector.broadcast %cst_188 : f32 to vector<8x64xf32>
    %544 = arith.addf %542, %543 : vector<8x64xf32>
    %545 = vector.extract_strided_slice %536 {offsets = [0, 64], sizes = [8, 64], strides = [1, 1]} : vector<8x256xf32> to vector<8x64xf32>
    %cst_189 = arith.constant 5.000000e-01 : f32
    %546 = vector.broadcast %cst_189 : f32 to vector<8x64xf32>
    %547 = arith.mulf %546, %545 : vector<8x64xf32>
    %548 = math.tanh %547 : vector<8x64xf32>
    %cst_190 = arith.constant 5.000000e-01 : f32
    %549 = vector.broadcast %cst_190 : f32 to vector<8x64xf32>
    %550 = arith.mulf %549, %548 : vector<8x64xf32>
    %cst_191 = arith.constant 5.000000e-01 : f32
    %551 = vector.broadcast %cst_191 : f32 to vector<8x64xf32>
    %552 = arith.addf %550, %551 : vector<8x64xf32>
    %553 = vector.extract_strided_slice %536 {offsets = [0, 128], sizes = [8, 64], strides = [1, 1]} : vector<8x256xf32> to vector<8x64xf32>
    %554 = math.tanh %553 : vector<8x64xf32>
    %555 = vector.extract_strided_slice %536 {offsets = [0, 192], sizes = [8, 64], strides = [1, 1]} : vector<8x256xf32> to vector<8x64xf32>
    %cst_192 = arith.constant 5.000000e-01 : f32
    %556 = vector.broadcast %cst_192 : f32 to vector<8x64xf32>
    %557 = arith.mulf %556, %555 : vector<8x64xf32>
    %558 = math.tanh %557 : vector<8x64xf32>
    %cst_193 = arith.constant 5.000000e-01 : f32
    %559 = vector.broadcast %cst_193 : f32 to vector<8x64xf32>
    %560 = arith.mulf %559, %558 : vector<8x64xf32>
    %cst_194 = arith.constant 5.000000e-01 : f32
    %561 = vector.broadcast %cst_194 : f32 to vector<8x64xf32>
    %562 = arith.addf %560, %561 : vector<8x64xf32>
    %563 = arith.mulf %552, %495 : vector<8x64xf32>
    %564 = arith.mulf %544, %554 : vector<8x64xf32>
    %565 = arith.addf %563, %564 : vector<8x64xf32>
    %566 = math.tanh %565 : vector<8x64xf32>
    %567 = arith.mulf %562, %566 : vector<8x64xf32>
    %568 = tpu.concatenate %567, %531 in 1 : vector<8x64xf32>, vector<8x64xf32> -> vector<8x128xf32>
    %cst_195 = arith.constant dense<0.000000e+00> : vector<8x256xf32>
    %569 = tpu.matmul %568, %39, %cst_195 {dimension_numbers = #tpu.dot_dimension_numbers<[1], [0], [0], [1], [0, 0, 1, 1], [], []>} : vector<8x128xf32>, vector<128x256xf32>, vector<8x256xf32> -> vector<8x256xf32>
    %570 = arith.addf %569, %40 : vector<8x256xf32>
    %571 = vector.extract_strided_slice %570 {offsets = [0, 0], sizes = [8, 64], strides = [1, 1]} : vector<8x256xf32> to vector<8x64xf32>
    %cst_196 = arith.constant 5.000000e-01 : f32
    %572 = vector.broadcast %cst_196 : f32 to vector<8x64xf32>
    %573 = arith.mulf %572, %571 : vector<8x64xf32>
    %574 = math.tanh %573 : vector<8x64xf32>
    %cst_197 = arith.constant 5.000000e-01 : f32
    %575 = vector.broadcast %cst_197 : f32 to vector<8x64xf32>
    %576 = arith.mulf %575, %574 : vector<8x64xf32>
    %cst_198 = arith.constant 5.000000e-01 : f32
    %577 = vector.broadcast %cst_198 : f32 to vector<8x64xf32>
    %578 = arith.addf %576, %577 : vector<8x64xf32>
    %579 = vector.extract_strided_slice %570 {offsets = [0, 64], sizes = [8, 64], strides = [1, 1]} : vector<8x256xf32> to vector<8x64xf32>
    %cst_199 = arith.constant 5.000000e-01 : f32
    %580 = vector.broadcast %cst_199 : f32 to vector<8x64xf32>
    %581 = arith.mulf %580, %579 : vector<8x64xf32>
    %582 = math.tanh %581 : vector<8x64xf32>
    %cst_200 = arith.constant 5.000000e-01 : f32
    %583 = vector.broadcast %cst_200 : f32 to vector<8x64xf32>
    %584 = arith.mulf %583, %582 : vector<8x64xf32>
    %cst_201 = arith.constant 5.000000e-01 : f32
    %585 = vector.broadcast %cst_201 : f32 to vector<8x64xf32>
    %586 = arith.addf %584, %585 : vector<8x64xf32>
    %587 = vector.extract_strided_slice %570 {offsets = [0, 128], sizes = [8, 64], strides = [1, 1]} : vector<8x256xf32> to vector<8x64xf32>
    %588 = math.tanh %587 : vector<8x64xf32>
    %589 = vector.extract_strided_slice %570 {offsets = [0, 192], sizes = [8, 64], strides = [1, 1]} : vector<8x256xf32> to vector<8x64xf32>
    %cst_202 = arith.constant 5.000000e-01 : f32
    %590 = vector.broadcast %cst_202 : f32 to vector<8x64xf32>
    %591 = arith.mulf %590, %589 : vector<8x64xf32>
    %592 = math.tanh %591 : vector<8x64xf32>
    %cst_203 = arith.constant 5.000000e-01 : f32
    %593 = vector.broadcast %cst_203 : f32 to vector<8x64xf32>
    %594 = arith.mulf %593, %592 : vector<8x64xf32>
    %cst_204 = arith.constant 5.000000e-01 : f32
    %595 = vector.broadcast %cst_204 : f32 to vector<8x64xf32>
    %596 = arith.addf %594, %595 : vector<8x64xf32>
    %597 = arith.mulf %586, %529 : vector<8x64xf32>
    %598 = arith.mulf %578, %588 : vector<8x64xf32>
    %599 = arith.addf %597, %598 : vector<8x64xf32>
    %600 = math.tanh %599 : vector<8x64xf32>
    %601 = arith.mulf %596, %600 : vector<8x64xf32>
    %c8_i32 = arith.constant 8 : i32
    %c0_205 = arith.constant 0 : index
    %c0_206 = arith.constant 0 : index
    %602 = vector.load %arg6[%c0_205, %c0_206] : memref<64x12xf32, #tpu.memory_space<vmem>>, vector<64x12xf32>
    %cst_207 = arith.constant dense<0.000000e+00> : vector<8x12xf32>
    %603 = tpu.matmul %601, %602, %cst_207 {dimension_numbers = #tpu.dot_dimension_numbers<[1], [0], [0], [1], [0, 0, 1, 1], [], []>} : vector<8x64xf32>, vector<64x12xf32>, vector<8x12xf32> -> vector<8x12xf32>
    %c0_208 = arith.constant 0 : index
    %c0_209 = arith.constant 0 : index
    %604 = vector.load %arg7[%c0_208, %c0_209] : memref<1x12xf32, #tpu.memory_space<vmem>>, vector<1x12xf32>
    %605 = vector.broadcast %604 : vector<1x12xf32> to vector<8x12xf32>
    %606 = arith.addf %603, %605 : vector<8x12xf32>
    %c0_210 = arith.constant 0 : index
    %c0_211 = arith.constant 0 : index
    %607 = vector.load %arg8[%c0_210, %c0_211] : memref<8x12xf32, #tpu.memory_space<vmem>>, vector<8x12xf32>
    tpu.vector_store %arg8[%c0_210, %c0_211], %606 {strides = array<i32>} : memref<8x12xf32, #tpu.memory_space<vmem>>, vector<8x12xf32>,
    return
  }
}

</mosaic_0001>

<llo_original>
// kernel: tpu_custom_call.1
$region0: #{tpu_custom_call.1}
  #allocation0 [shape = 'u32[]', space=smem, size = 0x4, offset = 0x4, fixed_abs, tag = 'smem constant byte address 0x4 - core index']
  #allocation1 [shape = 'u32[144,128]{1,0:T(1,128)}', space=vmem, size = 0x12000, scoped, tag = 'internal scratch']
  #allocation2 [shape = 'f32[8,8,256]{2,1,0:T(8,128)}', space=vmem, size = 0x10000, scoped, tag = 'scratch operand']
  %s0 = inlined_call_operand.vmem [shape: f32[64,34], index: 0, kind: input, shape index: {}]
  %s1 = inlined_call_operand.hbm [shape: f32[34,256], index: 1, kind: input, shape index: {}]
  %s2 = inlined_call_operand.vmem [shape: f32[64,256], index: 2, kind: input, shape index: {}]
  %s3 = inlined_call_operand.vmem [shape: f32[1,256], index: 3, kind: input, shape index: {}]
  %s4 = inlined_call_operand.hbm [shape: f32[128,256], index: 4, kind: input, shape index: {}]
  %s5 = inlined_call_operand.vmem [shape: f32[8,256], index: 5, kind: input, shape index: {}]
  %s6 = inlined_call_operand.vmem [shape: f32[64,12], index: 6, kind: input, shape index: {}]
  %s7 = inlined_call_operand.vmem [shape: f32[1,12], index: 7, kind: input, shape index: {}]
  %s8 = inlined_call_operand.hbm [shape: f32[8,12], index: 8, kind: output, shape index: {}]
  %s9 = sld [smem:[#allocation0]]
  $region50: #{tpu_custom_call.1} parent=0
    _
  %s11 = ssub.s32 1, %s9
  %s12 = scalar_select 0, %s11, %s9
  $region1: #{tpu_custom_call.1} parent=0
    #allocation3 [shape = 'u8[40960]{0}', space=vmem, size = 0xa000, scoped, tag = 'input window, operand 1, single buffered']
    #allocation4 [shape = 's32[1]{0}', space=sflag, size = 0x4, scoped, tag = 'scoped memory for tpu_custom_call.1']
    #allocation5 [shape = 's32[1]{0}', space=sflag, size = 0x4, scoped, tag = 'scoped memory for tpu_custom_call.1']
    #allocation6 [shape = 'u8[131072]{0}', space=vmem, size = 0x20000, scoped, tag = 'input window, operand 4, single buffered']
    #allocation7 [shape = 's32[1]{0}', space=sflag, size = 0x4, scoped, tag = 'scoped memory for tpu_custom_call.1']
    #allocation8 [shape = 'u8[4096]{0}', space=vmem, size = 0x1000, scoped, tag = 'output window, operand 0, single buffered']
    %13 = vsyncpa [#allocation4], 0
    %14 = vsyncpa [#allocation7], 0
    %15 = vsyncpa [#allocation5], 0
    // Predicated region
    $region2: #{tpu_custom_call.1} parent=1 // pred_check
      _
    $region3: #{tpu_custom_call.1} parent=1 // pred_check_branch
      %17 = sbr.rel (0) target = $region5
    $region4: #{tpu_custom_call.1} parent=1 // pred_region
      _
    $region5: #{tpu_custom_call.1} parent=1 // pred_fallthru
      _
    // Predicated region
    $region6: #{tpu_custom_call.1} parent=1 // pred_check
      _
    $region7: #{tpu_custom_call.1} parent=1 // pred_check_branch
      %19 = sbr.rel (0) target = $region9
    $region8: #{tpu_custom_call.1} parent=1 // pred_region
      %s21 = ssub.s32 1280, 1280
      %22 = vsyncadd [#allocation4], %s21
      %s23 = sshll.u32 [#allocation3], 4
      %s24 = int_to_ptr.vmem [resolvable:$true] %s23
      %29 = dma.hbm_to_vmem [thread:$0]  %s1, 1280, %s24, [#allocation4], 256, 256, 16
    $region9: #{tpu_custom_call.1} parent=1 // pred_fallthru
      _
    // Predicated region
    $region10: #{tpu_custom_call.1} parent=1 // pred_check
      _
    $region11: #{tpu_custom_call.1} parent=1 // pred_check_branch
      %31 = sbr.rel (0) target = $region13
    $region12: #{tpu_custom_call.1} parent=1 // pred_region
      _
    $region13: #{tpu_custom_call.1} parent=1 // pred_fallthru
      _
    // Predicated region
    $region14: #{tpu_custom_call.1} parent=1 // pred_check
      _
    $region15: #{tpu_custom_call.1} parent=1 // pred_check_branch
      %33 = sbr.rel (0) target = $region17
    $region16: #{tpu_custom_call.1} parent=1 // pred_region
      _
    $region17: #{tpu_custom_call.1} parent=1 // pred_fallthru
      _
    // Predicated region
    $region18: #{tpu_custom_call.1} parent=1 // pred_check
      _
    $region19: #{tpu_custom_call.1} parent=1 // pred_check_branch
      %35 = sbr.rel (0) target = $region21
    $region20: #{tpu_custom_call.1} parent=1 // pred_region
      %s37 = ssub.s32 4096, 4096
      %38 = vsyncadd [#allocation7], %s37
      %s39 = sshll.u32 [#allocation6], 4
      %s40 = int_to_ptr.vmem [resolvable:$true] %s39
      %45 = dma.hbm_to_vmem [thread:$0]  %s4, 4096, %s40, [#allocation7], 256, 256, 16
    $region21: #{tpu_custom_call.1} parent=1 // pred_fallthru
      _
    // Predicated region
    $region22: #{tpu_custom_call.1} parent=1 // pred_check
      _
    $region23: #{tpu_custom_call.1} parent=1 // pred_check_branch
      %47 = sbr.rel (0) target = $region25
    $region24: #{tpu_custom_call.1} parent=1 // pred_region
      _
    $region25: #{tpu_custom_call.1} parent=1 // pred_fallthru
      _
    // Predicated region
    $region26: #{tpu_custom_call.1} parent=1 // pred_check
      _
    $region27: #{tpu_custom_call.1} parent=1 // pred_check_branch
      %49 = sbr.rel (0) target = $region29
    $region28: #{tpu_custom_call.1} parent=1 // pred_region
      _
    $region29: #{tpu_custom_call.1} parent=1 // pred_fallthru
      _
    // Predicated region
    $region30: #{tpu_custom_call.1} parent=1 // pred_check
      _
    $region31: #{tpu_custom_call.1} parent=1 // pred_check_branch
      %51 = sbr.rel (0) target = $region33
    $region32: #{tpu_custom_call.1} parent=1 // pred_region
      _
    $region33: #{tpu_custom_call.1} parent=1 // pred_fallthru
      _
    // Predicated region
    $region34: #{tpu_custom_call.1} parent=1 // pred_check
      _
    $region35: #{tpu_custom_call.1} parent=1 // pred_check_branch
      %53 = sbr.rel (0) target = $region37
    $region36: #{tpu_custom_call.1} parent=1 // pred_region
      %54 = dma.done [#allocation4], 1280
    $region37: #{tpu_custom_call.1} parent=1 // pred_fallthru
      _
    // Predicated region
    $region38: #{tpu_custom_call.1} parent=1 // pred_check
      _
    $region39: #{tpu_custom_call.1} parent=1 // pred_check_branch
      %56 = sbr.rel (0) target = $region41
    $region40: #{tpu_custom_call.1} parent=1 // pred_region
      %57 = dma.done [#allocation7], 4096
    $region41: #{tpu_custom_call.1} parent=1 // pred_fallthru
      _
    %v58 = vld [vmem:[%s0] sm:$0xff]
    %v59 = vld [vmem:[%s0 + $0x8] sm:$0xff]
    %v60 = vld [vmem:[%s0 + $0x10] sm:$0xff]
    %v61 = vld [vmem:[%s0 + $0x18] sm:$0xff]
    %v62 = vld [vmem:[%s0 + $0x20] sm:$0xff]
    %v63 = vld [vmem:[%s0 + $0x28] sm:$0xff]
    %v64 = vld [vmem:[%s0 + $0x30] sm:$0xff]
    %v65 = vld [vmem:[%s0 + $0x38] sm:$0xff]
    %v66 = vld [vmem:[#allocation3] sm:$0xff]
    %v67 = vld [vmem:[#allocation3 + $0x8] sm:$0xff]
    %v68 = vld [vmem:[#allocation3 + $0x10] sm:$0xff]
    %v69 = vld [vmem:[#allocation3 + $0x18] sm:$0xff]
    %v70 = vld [vmem:[#allocation3 + $0x20] sm:$0xff]
    %v71 = vld [vmem:[#allocation3 + $0x28] sm:$0xff]
    %v72 = vld [vmem:[#allocation3 + $0x30] sm:$0xff]
    %v73 = vld [vmem:[#allocation3 + $0x38] sm:$0xff]
    %v74 = vld [vmem:[#allocation3 + $0x40] sm:$0x3]
    %v75 = vld [vmem:[#allocation3 + $0x48] sm:$0x3]
    %v76 = vld [vmem:[%s3] sm:$0x3]
    %v78 = vlaneseq
    %v79 = vshrl.u32 %v78, 7
    %v80 = vsub.s32 0, %v79
    %v81 = vrot.slane %v76, %v80
    %v82 = vlaneseq
    %v83 = vshrl.u32 %v82, 7
    %v84 = vsub.s32 1, %v83
    %v85 = vrot.slane %v76, %v84
    %vm88 = vcmask 277504
    %v90 = vsel %vm88, %v58, 0
    %v93 = vsel %vm88, %v59, 0
    %v96 = vsel %vm88, %v60, 0
    %v99 = vsel %vm88, %v61, 0
    %v102 = vsel %vm88, %v62, 0
    %v105 = vsel %vm88, %v63, 0
    %v108 = vsel %vm88, %v64, 0
    %v111 = vsel %vm88, %v65, 0
    %vm113 = vcmask 1041408
    %v115 = vsel %vm113, %v74, 0
    %v118 = vsel %vm113, %v75, 0
    %120 = vmatprep.subr.mxu0 %v67
    %121 = vmatpush1.msra.mxu0 %v66
    %122 = vmatprep.subr.mxu0 %v69
    %123 = vmatpush1.msra.mxu0 %v68
    %124 = vmatprep.subr.mxu0 %v71
    %125 = vmatpush1.msra.mxu0 %v70
    %126 = vmatprep.subr.mxu0 %v73
    %127 = vmatpush1.msra.mxu0 %v72
    %128 = vmatprep.subr.mxu0 %v118
    %129 = vmatpush1.msra.mxu0 %v115
    %130 = vmatprep.subr.mxu0 0.0
    %131 = vmatpush1.msra.mxu0 0.0
    %132 = vmatprep.subr.mxu0 0.0
    %133 = vmatpush1.msra.mxu0 0.0
    %134 = vmatprep.subr.mxu0 0.0
    %135 = vmatpush1.msra.mxu0 0.0
    %136 = vmatprep.subr.mxu0 0.0
    %137 = vmatpush1.msra.mxu0 0.0
    %138 = vmatprep.subr.mxu0 0.0
    %139 = vmatpush1.msra.mxu0 0.0
    %140 = vmatprep.subr.mxu0 0.0
    %141 = vmatpush1.msra.mxu0 0.0
    %142 = vmatprep.subr.mxu0 0.0
    %143 = vmatpush1.msra.mxu0 0.0
    %144 = vmatprep.subr.mxu0 0.0
    %145 = vmatpush1.msra.mxu0 0.0
    %146 = vmatprep.subr.mxu0 0.0
    %147 = vmatpush1.msra.mxu0 0.0
    %148 = vmatprep.subr.mxu0 0.0
    %149 = vmatpush1.msra.mxu0 0.0
    %150 = vmatprep.subr.mxu0 0.0
    %151 = vmatpush1.msra.mxu0 0.0
    %152 = vmatprep.subr.mxu0 0.0
    %153 = vmatpush1.msra.mxu0 0.0
    %154 = vmatprep.subr.mxu0 0.0
    %155 = vmatpush1.msra.mxu0 0.0
    %156 = vmatprep.subr.mxu0 0.0
    %157 = vmatpush1.msra.mxu0 0.0
    %158 = vmatprep.subr.mxu0 0.0
    %159 = vmatpush1.msra.mxu0 0.0
    %160 = vmatprep.subr.mxu0 0.0
    %161 = vmatpush1.msra.mxu0 0.0
    %162 = vmatprep.subr.mxu0 0.0
    %163 = vmatpush1.msra.mxu0 0.0
    %164 = vmatprep.subr.mxu0 0.0
    %165 = vmatpush1.msra.mxu0 0.0
    %166 = vmatprep.subr.mxu0 0.0
    %167 = vmatpush1.msra.mxu0 0.0
    %168 = vmatprep.subr.mxu0 0.0
    %169 = vmatpush1.msra.mxu0 0.0
    %170 = vmatprep.subr.mxu0 0.0
    %171 = vmatpush1.msra.mxu0 0.0
    %172 = vmatprep.subr.mxu0 0.0
    %173 = vmatpush1.msra.mxu0 0.0
    %174 = vmatprep.subr.mxu0 0.0
    %175 = vmatpush1.msra.mxu0 0.0
    %176 = vmatprep.subr.mxu0 0.0
    %177 = vmatpush1.msra.mxu0 0.0
    %178 = vmatprep.subr.mxu0 0.0
    %179 = vmatpush1.msra.mxu0 0.0
    %180 = vmatprep.subr.mxu0 0.0
    %181 = vmatpush1.msra.mxu0 0.0
    %182 = vmatprep.subr.mxu0 0.0
    %183 = vmatpush1.msra.mxu0 0.0
    %184 = vmatprep.mubr.f32.mxu0 0.0
    %185 = vmatmul.mubr.f32.gmra.mrb[0].mxu0 %v90
    %v186 = vpop.f32.mrb[0].mxu0
    %v187 = vadd.f32 %v81, %v186
    %v188 = vpop.f32.mrb[0].mxu0
    %v189 = vadd.f32 %v85, %v188
    %190 = vmatprep.mubr.f32.mxu0 0.0
    %191 = vmatmul.mubr.f32.gmra.mrb[0].mxu0 %v93
    %v192 = vpop.f32.mrb[0].mxu0
    %v193 = vadd.f32 %v81, %v192
    %v194 = vpop.f32.mrb[0].mxu0
    %v195 = vadd.f32 %v85, %v194
    %196 = vmatprep.mubr.f32.mxu0 0.0
    %197 = vmatmul.mubr.f32.gmra.mrb[0].mxu0 %v96
    %v198 = vpop.f32.mrb[0].mxu0
    %v199 = vadd.f32 %v81, %v198
    %v200 = vpop.f32.mrb[0].mxu0
    %v201 = vadd.f32 %v85, %v200
    %202 = vmatprep.mubr.f32.mxu0 0.0
    %203 = vmatmul.mubr.f32.gmra.mrb[0].mxu0 %v99
    %v204 = vpop.f32.mrb[0].mxu0
    %v205 = vadd.f32 %v81, %v204
    %v206 = vpop.f32.mrb[0].mxu0
    %v207 = vadd.f32 %v85, %v206
    %208 = vmatprep.mubr.f32.mxu0 0.0
    %209 = vmatmul.mubr.f32.gmra.mrb[0].mxu0 %v102
    %v210 = vpop.f32.mrb[0].mxu0
    %v211 = vadd.f32 %v81, %v210
    %v212 = vpop.f32.mrb[0].mxu0
    %v213 = vadd.f32 %v85, %v212
    %214 = vmatprep.mubr.f32.mxu0 0.0
    %215 = vmatmul.mubr.f32.gmra.mrb[0].mxu0 %v105
    %v216 = vpop.f32.mrb[0].mxu0
    %v217 = vadd.f32 %v81, %v216
    %v218 = vpop.f32.mrb[0].mxu0
    %v219 = vadd.f32 %v85, %v218
    %220 = vmatprep.mubr.f32.mxu0 0.0
    %221 = vmatmul.mubr.f32.gmra.mrb[0].mxu0 %v108
    %v222 = vpop.f32.mrb[0].mxu0
    %v223 = vadd.f32 %v81, %v222
    %v224 = vpop.f32.mrb[0].mxu0
    %v225 = vadd.f32 %v85, %v224
    %226 = vmatprep.mubr.f32.mxu0 0.0
    %227 = vmatmul.mubr.f32.gmra.mrb[0].mxu0 %v111
    %v228 = vpop.f32.mrb[0].mxu0
    %v229 = vadd.f32 %v81, %v228
    %v230 = vpop.f32.mrb[0].mxu0
    %v231 = vadd.f32 %v85, %v230
    %232 = vdwg.mxu0
    %233 = vst [vmem:[#allocation2] sm:$0xff] %v187
    %234 = vst [vmem:[#allocation2 + $0x8] sm:$0xff] %v189
    %s235 = scalar_lea.vmem [#allocation2], 16
    %236 = vst [vmem:[%s235] sm:$0xff] %v193
    %237 = vst [vmem:[%s235 + $0x8] sm:$0xff] %v195
    %s238 = scalar_lea.vmem [#allocation2], 32
    %239 = vst [vmem:[%s238] sm:$0xff] %v199
    %240 = vst [vmem:[%s238 + $0x8] sm:$0xff] %v201
    %s241 = scalar_lea.vmem [#allocation2], 48
    %242 = vst [vmem:[%s241] sm:$0xff] %v205
    %243 = vst [vmem:[%s241 + $0x8] sm:$0xff] %v207
    %s244 = scalar_lea.vmem [#allocation2], 64
    %245 = vst [vmem:[%s244] sm:$0xff] %v211
    %246 = vst [vmem:[%s244 + $0x8] sm:$0xff] %v213
    %s247 = scalar_lea.vmem [#allocation2], 80
    %248 = vst [vmem:[%s247] sm:$0xff] %v217
    %249 = vst [vmem:[%s247 + $0x8] sm:$0xff] %v219
    %s250 = scalar_lea.vmem [#allocation2], 96
    %251 = vst [vmem:[%s250] sm:$0xff] %v223
    %252 = vst [vmem:[%s250 + $0x8] sm:$0xff] %v225
    %s253 = scalar_lea.vmem [#allocation2], 112
    %254 = vst [vmem:[%s253] sm:$0xff] %v229
    %255 = vst [vmem:[%s253 + $0x8] sm:$0xff] %v231
    %v256 = vld [vmem:[%s2] sm:$0xff]
    %v257 = vld [vmem:[%s2 + $0x8] sm:$0xff]
    %v258 = vld [vmem:[%s2 + $0x10] sm:$0xff]
    %v259 = vld [vmem:[%s2 + $0x18] sm:$0xff]
    %v260 = vld [vmem:[%s2 + $0x20] sm:$0xff]
    %v261 = vld [vmem:[%s2 + $0x28] sm:$0xff]
    %v262 = vld [vmem:[%s2 + $0x30] sm:$0xff]
    %v263 = vld [vmem:[%s2 + $0x38] sm:$0xff]
    %v264 = vld [vmem:[%s2 + $0x40] sm:$0xff]
    %v265 = vld [vmem:[%s2 + $0x48] sm:$0xff]
    %v266 = vld [vmem:[%s2 + $0x50] sm:$0xff]
    %v267 = vld [vmem:[%s2 + $0x58] sm:$0xff]
    %v268 = vld [vmem:[%s2 + $0x60] sm:$0xff]
    %v269 = vld [vmem:[%s2 + $0x68] sm:$0xff]
    %v270 = vld [vmem:[%s2 + $0x70] sm:$0xff]
    %v271 = vld [vmem:[%s2 + $0x78] sm:$0xff]
    %v272 = vld [vmem:[#allocation6] sm:$0xff]
    %v273 = vld [vmem:[#allocation6 + $0x8] sm:$0xff]
    %v274 = vld [vmem:[#allocation6 + $0x10] sm:$0xff]
    %v275 = vld [vmem:[#allocation6 + $0x18] sm:$0xff]
    %v276 = vld [vmem:[#allocation6 + $0x20] sm:$0xff]
    %v277 = vld [vmem:[#allocation6 + $0x28] sm:$0xff]
    %v278 = vld [vmem:[#allocation6 + $0x30] sm:$0xff]
    %v279 = vld [vmem:[#allocation6 + $0x38] sm:$0xff]
    %v280 = vld [vmem:[#allocation6 + $0x40] sm:$0xff]
    %v281 = vld [vmem:[#allocation6 + $0x48] sm:$0xff]
    %v282 = vld [vmem:[#allocation6 + $0x50] sm:$0xff]
    %v283 = vld [vmem:[#allocation6 + $0x58] sm:$0xff]
    %v284 = vld [vmem:[#allocation6 + $0x60] sm:$0xff]
    %v285 = vld [vmem:[#allocation6 + $0x68] sm:$0xff]
    %v286 = vld [vmem:[#allocation6 + $0x70] sm:$0xff]
    %v287 = vld [vmem:[#allocation6 + $0x78] sm:$0xff]
    %v288 = vld [vmem:[#allocation6 + $0x80] sm:$0xff]
    %v289 = vld [vmem:[#allocation6 + $0x88] sm:$0xff]
    %v290 = vld [vmem:[#allocation6 + $0x90] sm:$0xff]
    %v291 = vld [vmem:[#allocation6 + $0x98] sm:$0xff]
    %v292 = vld [vmem:[#allocation6 + $0xa0] sm:$0xff]
    %v293 = vld [vmem:[#allocation6 + $0xa8] sm:$0xff]
    %v294 = vld [vmem:[#allocation6 + $0xb0] sm:$0xff]
    %v295 = vld [vmem:[#allocation6 + $0xb8] sm:$0xff]
    %v296 = vld [vmem:[#allocation6 + $0xc0] sm:$0xff]
    %v297 = vld [vmem:[#allocation6 + $0xc8] sm:$0xff]
    %v298 = vld [vmem:[#allocation6 + $0xd0] sm:$0xff]
    %v299 = vld [vmem:[#allocation6 + $0xd8] sm:$0xff]
    %v300 = vld [vmem:[#allocation6 + $0xe0] sm:$0xff]
    %v301 = vld [vmem:[#allocation6 + $0xe8] sm:$0xff]
    %v302 = vld [vmem:[#allocation6 + $0xf0] sm:$0xff]
    %v303 = vld [vmem:[#allocation6 + $0xf8] sm:$0xff]
    %v304 = vld [vmem:[%s5] sm:$0xff]
    %v305 = vld [vmem:[%s5 + $0x8] sm:$0xff]
    %v306 = vld [vmem:[#allocation2] sm:$0xff]
    %v307 = vld [vmem:[#allocation2 + $0x8] sm:$0xff]
    %vm308 = vcmask 523264
    %v310 = vsel %vm308, 0.0, 0
    %312 = vmatprep.subr.mxu0 %v257
    %313 = vmatpush1.msra.mxu0 %v256
    %314 = vmatprep.subr.mxu0 %v259
    %315 = vmatpush1.msra.mxu0 %v258
    %316 = vmatprep.subr.mxu0 %v261
    %317 = vmatpush1.msra.mxu0 %v260
    %318 = vmatprep.subr.mxu0 %v263
    %319 = vmatpush1.msra.mxu0 %v262
    %320 = vmatprep.subr.mxu0 %v265
    %321 = vmatpush1.msra.mxu0 %v264
    %322 = vmatprep.subr.mxu0 %v267
    %323 = vmatpush1.msra.mxu0 %v266
    %324 = vmatprep.subr.mxu0 %v269
    %325 = vmatpush1.msra.mxu0 %v268
    %326 = vmatprep.subr.mxu0 %v271
    %327 = vmatpush1.msra.mxu0 %v270
    %328 = vmatprep.subr.mxu0 0.0
    %329 = vmatpush1.msra.mxu0 0.0
    %330 = vmatprep.subr.mxu0 0.0
    %331 = vmatpush1.msra.mxu0 0.0
    %332 = vmatprep.subr.mxu0 0.0
    %333 = vmatpush1.msra.mxu0 0.0
    %334 = vmatprep.subr.mxu0 0.0
    %335 = vmatpush1.msra.mxu0 0.0
    %336 = vmatprep.subr.mxu0 0.0
    %337 = vmatpush1.msra.mxu0 0.0
    %338 = vmatprep.subr.mxu0 0.0
    %339 = vmatpush1.msra.mxu0 0.0
    %340 = vmatprep.subr.mxu0 0.0
    %341 = vmatpush1.msra.mxu0 0.0
    %342 = vmatprep.subr.mxu0 0.0
    %343 = vmatpush1.msra.mxu0 0.0
    %344 = vmatprep.subr.mxu0 0.0
    %345 = vmatpush1.msra.mxu0 0.0
    %346 = vmatprep.subr.mxu0 0.0
    %347 = vmatpush1.msra.mxu0 0.0
    %348 = vmatprep.subr.mxu0 0.0
    %349 = vmatpush1.msra.mxu0 0.0
    %350 = vmatprep.subr.mxu0 0.0
    %351 = vmatpush1.msra.mxu0 0.0
    %352 = vmatprep.subr.mxu0 0.0
    %353 = vmatpush1.msra.mxu0 0.0
    %354 = vmatprep.subr.mxu0 0.0
    %355 = vmatpush1.msra.mxu0 0.0
    %356 = vmatprep.subr.mxu0 0.0
    %357 = vmatpush1.msra.mxu0 0.0
    %358 = vmatprep.subr.mxu0 0.0
    %359 = vmatpush1.msra.mxu0 0.0
    %360 = vmatprep.subr.mxu0 0.0
    %361 = vmatpush1.msra.mxu0 0.0
    %362 = vmatprep.subr.mxu0 0.0
    %363 = vmatpush1.msra.mxu0 0.0
    %364 = vmatprep.subr.mxu0 0.0
    %365 = vmatpush1.msra.mxu0 0.0
    %366 = vmatprep.subr.mxu0 0.0
    %367 = vmatpush1.msra.mxu0 0.0
    %368 = vmatprep.subr.mxu0 0.0
    %369 = vmatpush1.msra.mxu0 0.0
    %370 = vmatprep.subr.mxu0 0.0
    %371 = vmatpush1.msra.mxu0 0.0
    %372 = vmatprep.subr.mxu0 0.0
    %373 = vmatpush1.msra.mxu0 0.0
    %374 = vmatprep.subr.mxu0 0.0
    %375 = vmatpush1.msra.mxu0 0.0
    %376 = vmatprep.mubr.f32.mxu0 0.0
    %377 = vmatmul.mubr.f32.gmra.mrb[0].mxu0 %v310
    %v378 = vpop.f32.mrb[0].mxu0
    %v379 = vadd.f32 0.0, %v378
    %v380 = vpop.f32.mrb[0].mxu0
    %v381 = vadd.f32 0.0, %v380
    %382 = vdwg.mxu0
    %v383 = vadd.f32 %v306, %v379
    %v384 = vadd.f32 %v307, %v381
    %v385 = vmul.f32 %v383, 0.5
    %v386 = vtanh.pop %v385
    %v387 = vmul.f32 %v386, 0.5
    %v388 = vadd.f32 %v387, 0.5
    %v389 = vtanh.pop %v384
    %v390 = vmul.f32 %v384, 0.5
    %v391 = vtanh.pop %v390
    %v392 = vmul.f32 %v391, 0.5
    %v393 = vadd.f32 %v392, 0.5
    %v394 = vmul.f32 %v388, 0.0
    %v395 = vmul.f32 %v388, %v389
    %397 = vrot.lane.b32.xlu0 %v395, 64
    %v398 = vpop.permute.xlu0 %397
    %v400 = vadd.f32 %v394, %v398
    %v401 = vtanh.pop %v400
    %v402 = vmul.f32 %v393, %v401
    %404 = vrot.lane.b32.xlu0 %v402, 64
    %v405 = vpop.permute.xlu0 %404
    %v407 = vsel %vm308, %v405, 0.0
    %408 = vmatprep.subr.mxu0 %v273
    %409 = vmatpush1.msra.mxu0 %v272
    %410 = vmatprep.subr.mxu0 %v275
    %411 = vmatpush1.msra.mxu0 %v274
    %412 = vmatprep.subr.mxu0 %v277
    %413 = vmatpush1.msra.mxu0 %v276
    %414 = vmatprep.subr.mxu0 %v279
    %415 = vmatpush1.msra.mxu0 %v278
    %416 = vmatprep.subr.mxu0 %v281
    %417 = vmatpush1.msra.mxu0 %v280
    %418 = vmatprep.subr.mxu0 %v283
    %419 = vmatpush1.msra.mxu0 %v282
    %420 = vmatprep.subr.mxu0 %v285
    %421 = vmatpush1.msra.mxu0 %v284
    %422 = vmatprep.subr.mxu0 %v287
    %423 = vmatpush1.msra.mxu0 %v286
    %424 = vmatprep.subr.mxu0 %v289
    %425 = vmatpush1.msra.mxu0 %v288
    %426 = vmatprep.subr.mxu0 %v291
    %427 = vmatpush1.msra.mxu0 %v290
    %428 = vmatprep.subr.mxu0 %v293
    %429 = vmatpush1.msra.mxu0 %v292
    %430 = vmatprep.subr.mxu0 %v295
    %431 = vmatpush1.msra.mxu0 %v294
    %432 = vmatprep.subr.mxu0 %v297
    %433 = vmatpush1.msra.mxu0 %v296
    %434 = vmatprep.subr.mxu0 %v299
    %435 = vmatpush1.msra.mxu0 %v298
    %436 = vmatprep.subr.mxu0 %v301
    %437 = vmatpush1.msra.mxu0 %v300
    %438 = vmatprep.subr.mxu0 %v303
    %439 = vmatpush1.msra.mxu0 %v302
    %440 = vmatprep.subr.mxu0 0.0
    %441 = vmatpush1.msra.mxu0 0.0
    %442 = vmatprep.subr.mxu0 0.0
    %443 = vmatpush1.msra.mxu0 0.0
    %444 = vmatprep.subr.mxu0 0.0
    %445 = vmatpush1.msra.mxu0 0.0
    %446 = vmatprep.subr.mxu0 0.0
    %447 = vmatpush1.msra.mxu0 0.0
    %448 = vmatprep.subr.mxu0 0.0
    %449 = vmatpush1.msra.mxu0 0.0
    %450 = vmatprep.subr.mxu0 0.0
    %451 = vmatpush1.msra.mxu0 0.0
    %452 = vmatprep.subr.mxu0 0.0
    %453 = vmatpush1.msra.mxu0 0.0
    %454 = vmatprep.subr.mxu0 0.0
    %455 = vmatpush1.msra.mxu0 0.0
    %456 = vmatprep.subr.mxu0 0.0
    %457 = vmatpush1.msra.mxu0 0.0
    %458 = vmatprep.subr.mxu0 0.0
    %459 = vmatpush1.msra.mxu0 0.0
    %460 = vmatprep.subr.mxu0 0.0
    %461 = vmatpush1.msra.mxu0 0.0
    %462 = vmatprep.subr.mxu0 0.0
    %463 = vmatpush1.msra.mxu0 0.0
    %464 = vmatprep.subr.mxu0 0.0
    %465 = vmatpush1.msra.mxu0 0.0
    %466 = vmatprep.subr.mxu0 0.0
    %467 = vmatpush1.msra.mxu0 0.0
    %468 = vmatprep.subr.mxu0 0.0
    %469 = vmatpush1.msra.mxu0 0.0
    %470 = vmatprep.subr.mxu0 0.0
    %471 = vmatpush1.msra.mxu0 0.0
    %472 = vmatprep.mubr.f32.mxu0 0.0
    %473 = vmatmul.mubr.f32.gmra.mrb[0].mxu0 %v407
    %v474 = vpop.f32.mrb[0].mxu0
    %v475 = vadd.f32 %v304, %v474
    %v476 = vpop.f32.mrb[0].mxu0
    %v477 = vadd.f32 %v305, %v476
    %478 = vdwg.mxu0
    %v479 = vmul.f32 %v475, 0.5
    %v480 = vtanh.pop %v479
    %v481 = vmul.f32 %v480, 0.5
    %v482 = vadd.f32 %v481, 0.5
    %v483 = vtanh.pop %v477
    %v484 = vmul.f32 %v477, 0.5
    %v485 = vtanh.pop %v484
    %v486 = vmul.f32 %v485, 0.5
    %v487 = vadd.f32 %v486, 0.5
    %v488 = vmul.f32 %v482, 0.0
    %v489 = vmul.f32 %v482, %v483
    %491 = vrot.lane.b32.xlu0 %v489, 64
    %v492 = vpop.permute.xlu0 %491
    %v494 = vadd.f32 %v488, %v492
    %v495 = vtanh.pop %v494
    %v496 = vmul.f32 %v487, %v495
    %v497 = vld [vmem:[%s235] sm:$0xff]
    %v498 = vld [vmem:[%s235 + $0x8] sm:$0xff]
    %v499 = vsel %vm308, %v405, 0
    %501 = vmatprep.subr.mxu0 %v257
    %502 = vmatpush1.msra.mxu0 %v256
    %503 = vmatprep.subr.mxu0 %v259
    %504 = vmatpush1.msra.mxu0 %v258
    %505 = vmatprep.subr.mxu0 %v261
    %506 = vmatpush1.msra.mxu0 %v260
    %507 = vmatprep.subr.mxu0 %v263
    %508 = vmatpush1.msra.mxu0 %v262
    %509 = vmatprep.subr.mxu0 %v265
    %510 = vmatpush1.msra.mxu0 %v264
    %511 = vmatprep.subr.mxu0 %v267
    %512 = vmatpush1.msra.mxu0 %v266
    %513 = vmatprep.subr.mxu0 %v269
    %514 = vmatpush1.msra.mxu0 %v268
    %515 = vmatprep.subr.mxu0 %v271
    %516 = vmatpush1.msra.mxu0 %v270
    %517 = vmatprep.subr.mxu0 0.0
    %518 = vmatpush1.msra.mxu0 0.0
    %519 = vmatprep.subr.mxu0 0.0
    %520 = vmatpush1.msra.mxu0 0.0
    %521 = vmatprep.subr.mxu0 0.0
    %522 = vmatpush1.msra.mxu0 0.0
    %523 = vmatprep.subr.mxu0 0.0
    %524 = vmatpush1.msra.mxu0 0.0
    %525 = vmatprep.subr.mxu0 0.0
    %526 = vmatpush1.msra.mxu0 0.0
    %527 = vmatprep.subr.mxu0 0.0
    %528 = vmatpush1.msra.mxu0 0.0
    %529 = vmatprep.subr.mxu0 0.0
    %530 = vmatpush1.msra.mxu0 0.0
    %531 = vmatprep.subr.mxu0 0.0
    %532 = vmatpush1.msra.mxu0 0.0
    %533 = vmatprep.subr.mxu0 0.0
    %534 = vmatpush1.msra.mxu0 0.0
    %535 = vmatprep.subr.mxu0 0.0
    %536 = vmatpush1.msra.mxu0 0.0
    %537 = vmatprep.subr.mxu0 0.0
    %538 = vmatpush1.msra.mxu0 0.0
    %539 = vmatprep.subr.mxu0 0.0
    %540 = vmatpush1.msra.mxu0 0.0
    %541 = vmatprep.subr.mxu0 0.0
    %542 = vmatpush1.msra.mxu0 0.0
    %543 = vmatprep.subr.mxu0 0.0
    %544 = vmatpush1.msra.mxu0 0.0
    %545 = vmatprep.subr.mxu0 0.0
    %546 = vmatpush1.msra.mxu0 0.0
    %547 = vmatprep.subr.mxu0 0.0
    %548 = vmatpush1.msra.mxu0 0.0
    %549 = vmatprep.subr.mxu0 0.0
    %550 = vmatpush1.msra.mxu0 0.0
    %551 = vmatprep.subr.mxu0 0.0
    %552 = vmatpush1.msra.mxu0 0.0
    %553 = vmatprep.subr.mxu0 0.0
    %554 = vmatpush1.msra.mxu0 0.0
    %555 = vmatprep.subr.mxu0 0.0
    %556 = vmatpush1.msra.mxu0 0.0
    %557 = vmatprep.subr.mxu0 0.0
    %558 = vmatpush1.msra.mxu0 0.0
    %559 = vmatprep.subr.mxu0 0.0
    %560 = vmatpush1.msra.mxu0 0.0
    %561 = vmatprep.subr.mxu0 0.0
    %562 = vmatpush1.msra.mxu0 0.0
    %563 = vmatprep.subr.mxu0 0.0
    %564 = vmatpush1.msra.mxu0 0.0
    %565 = vmatprep.mubr.f32.mxu0 0.0
    %566 = vmatmul.mubr.f32.gmra.mrb[0].mxu0 %v499
    %v567 = vpop.f32.mrb[0].mxu0
    %v568 = vadd.f32 0.0, %v567
    %v569 = vpop.f32.mrb[0].mxu0
    %v570 = vadd.f32 0.0, %v569
    %571 = vdwg.mxu0
    %v572 = vadd.f32 %v497, %v568
    %v573 = vadd.f32 %v498, %v570
    %v574 = vmul.f32 %v572, 0.5
    %v575 = vtanh.pop %v574
    %v576 = vmul.f32 %v575, 0.5
    %v577 = vadd.f32 %v576, 0.5
    %v578 = vtanh.pop %v573
    %v579 = vmul.f32 %v573, 0.5
    %v580 = vtanh.pop %v579
    %v581 = vmul.f32 %v580, 0.5
    %v582 = vadd.f32 %v581, 0.5
    %v583 = vmul.f32 %v577, %v400
    %v584 = vmul.f32 %v577, %v578
    %586 = vrot.lane.b32.xlu0 %v584, 64
    %v587 = vpop.permute.xlu0 %586
    %v589 = vadd.f32 %v583, %v587
    %v590 = vtanh.pop %v589
    %v591 = vmul.f32 %v582, %v590
    %593 = vrot.lane.b32.xlu0 %v591, 64
    %v594 = vpop.permute.xlu0 %593
    %v596 = vsel %vm308, %v594, %v496
    %597 = vmatprep.subr.mxu0 %v273
    %598 = vmatpush1.msra.mxu0 %v272
    %599 = vmatprep.subr.mxu0 %v275
    %600 = vmatpush1.msra.mxu0 %v274
    %601 = vmatprep.subr.mxu0 %v277
    %602 = vmatpush1.msra.mxu0 %v276
    %603 = vmatprep.subr.mxu0 %v279
    %604 = vmatpush1.msra.mxu0 %v278
    %605 = vmatprep.subr.mxu0 %v281
    %606 = vmatpush1.msra.mxu0 %v280
    %607 = vmatprep.subr.mxu0 %v283
    %608 = vmatpush1.msra.mxu0 %v282
    %609 = vmatprep.subr.mxu0 %v285
    %610 = vmatpush1.msra.mxu0 %v284
    %611 = vmatprep.subr.mxu0 %v287
    %612 = vmatpush1.msra.mxu0 %v286
    %613 = vmatprep.subr.mxu0 %v289
    %614 = vmatpush1.msra.mxu0 %v288
    %615 = vmatprep.subr.mxu0 %v291
    %616 = vmatpush1.msra.mxu0 %v290
    %617 = vmatprep.subr.mxu0 %v293
    %618 = vmatpush1.msra.mxu0 %v292
    %619 = vmatprep.subr.mxu0 %v295
    %620 = vmatpush1.msra.mxu0 %v294
    %621 = vmatprep.subr.mxu0 %v297
    %622 = vmatpush1.msra.mxu0 %v296
    %623 = vmatprep.subr.mxu0 %v299
    %624 = vmatpush1.msra.mxu0 %v298
    %625 = vmatprep.subr.mxu0 %v301
    %626 = vmatpush1.msra.mxu0 %v300
    %627 = vmatprep.subr.mxu0 %v303
    %628 = vmatpush1.msra.mxu0 %v302
    %629 = vmatprep.subr.mxu0 0.0
    %630 = vmatpush1.msra.mxu0 0.0
    %631 = vmatprep.subr.mxu0 0.0
    %632 = vmatpush1.msra.mxu0 0.0
    %633 = vmatprep.subr.mxu0 0.0
    %634 = vmatpush1.msra.mxu0 0.0
    %635 = vmatprep.subr.mxu0 0.0
    %636 = vmatpush1.msra.mxu0 0.0
    %637 = vmatprep.subr.mxu0 0.0
    %638 = vmatpush1.msra.mxu0 0.0
    %639 = vmatprep.subr.mxu0 0.0
    %640 = vmatpush1.msra.mxu0 0.0
    %641 = vmatprep.subr.mxu0 0.0
    %642 = vmatpush1.msra.mxu0 0.0
    %643 = vmatprep.subr.mxu0 0.0
    %644 = vmatpush1.msra.mxu0 0.0
    %645 = vmatprep.subr.mxu0 0.0
    %646 = vmatpush1.msra.mxu0 0.0
    %647 = vmatprep.subr.mxu0 0.0
    %648 = vmatpush1.msra.mxu0 0.0
    %649 = vmatprep.subr.mxu0 0.0
    %650 = vmatpush1.msra.mxu0 0.0
    %651 = vmatprep.subr.mxu0 0.0
    %652 = vmatpush1.msra.mxu0 0.0
    %653 = vmatprep.subr.mxu0 0.0
    %654 = vmatpush1.msra.mxu0 0.0
    %655 = vmatprep.subr.mxu0 0.0
    %656 = vmatpush1.msra.mxu0 0.0
    %657 = vmatprep.subr.mxu0 0.0
    %658 = vmatpush1.msra.mxu0 0.0
    %659 = vmatprep.subr.mxu0 0.0
    %660 = vmatpush1.msra.mxu0 0.0
    %661 = vmatprep.mubr.f32.mxu0 0.0
    %662 = vmatmul.mubr.f32.gmra.mrb[0].mxu0 %v596
    %v663 = vpop.f32.mrb[0].mxu0
    %v664 = vadd.f32 %v304, %v663
    %v665 = vpop.f32.mrb[0].mxu0
    %v666 = vadd.f32 %v305, %v665
    %667 = vdwg.mxu0
    %v668 = vmul.f32 %v664, 0.5
    %v669 = vtanh.pop %v668
    %v670 = vmul.f32 %v669, 0.5
    %v671 = vadd.f32 %v670, 0.5
    %v672 = vtanh.pop %v666
    %v673 = vmul.f32 %v666, 0.5
    %v674 = vtanh.pop %v673
    %v675 = vmul.f32 %v674, 0.5
    %v676 = vadd.f32 %v675, 0.5
    %v677 = vmul.f32 %v671, %v494
    %v678 = vmul.f32 %v671, %v672
    %680 = vrot.lane.b32.xlu0 %v678, 64
    %v681 = vpop.permute.xlu0 %680
    %v683 = vadd.f32 %v677, %v681
    %v684 = vtanh.pop %v683
    %v685 = vmul.f32 %v676, %v684
    %v686 = vld [vmem:[%s238] sm:$0xff]
    %v687 = vld [vmem:[%s238 + $0x8] sm:$0xff]
    %v688 = vsel %vm308, %v594, 0
    %690 = vmatprep.subr.mxu0 %v257
    %691 = vmatpush1.msra.mxu0 %v256
    %692 = vmatprep.subr.mxu0 %v259
    %693 = vmatpush1.msra.mxu0 %v258
    %694 = vmatprep.subr.mxu0 %v261
    %695 = vmatpush1.msra.mxu0 %v260
    %696 = vmatprep.subr.mxu0 %v263
    %697 = vmatpush1.msra.mxu0 %v262
    %698 = vmatprep.subr.mxu0 %v265
    %699 = vmatpush1.msra.mxu0 %v264
    %700 = vmatprep.subr.mxu0 %v267
    %701 = vmatpush1.msra.mxu0 %v266
    %702 = vmatprep.subr.mxu0 %v269
    %703 = vmatpush1.msra.mxu0 %v268
    %704 = vmatprep.subr.mxu0 %v271
    %705 = vmatpush1.msra.mxu0 %v270
    %706 = vmatprep.subr.mxu0 0.0
    %707 = vmatpush1.msra.mxu0 0.0
    %708 = vmatprep.subr.mxu0 0.0
    %709 = vmatpush1.msra.mxu0 0.0
    %710 = vmatprep.subr.mxu0 0.0
    %711 = vmatpush1.msra.mxu0 0.0
    %712 = vmatprep.subr.mxu0 0.0
    %713 = vmatpush1.msra.mxu0 0.0
    %714 = vmatprep.subr.mxu0 0.0
    %715 = vmatpush1.msra.mxu0 0.0
    %716 = vmatprep.subr.mxu0 0.0
    %717 = vmatpush1.msra.mxu0 0.0
    %718 = vmatprep.subr.mxu0 0.0
    %719 = vmatpush1.msra.mxu0 0.0
    %720 = vmatprep.subr.mxu0 0.0
    %721 = vmatpush1.msra.mxu0 0.0
    %722 = vmatprep.subr.mxu0 0.0
    %723 = vmatpush1.msra.mxu0 0.0
    %724 = vmatprep.subr.mxu0 0.0
    %725 = vmatpush1.msra.mxu0 0.0
    %726 = vmatprep.subr.mxu0 0.0
    %727 = vmatpush1.msra.mxu0 0.0
    %728 = vmatprep.subr.mxu0 0.0
    %729 = vmatpush1.msra.mxu0 0.0
    %730 = vmatprep.subr.mxu0 0.0
    %731 = vmatpush1.msra.mxu0 0.0
    %732 = vmatprep.subr.mxu0 0.0
    %733 = vmatpush1.msra.mxu0 0.0
    %734 = vmatprep.subr.mxu0 0.0
    %735 = vmatpush1.msra.mxu0 0.0
    %736 = vmatprep.subr.mxu0 0.0
    %737 = vmatpush1.msra.mxu0 0.0
    %738 = vmatprep.subr.mxu0 0.0
    %739 = vmatpush1.msra.mxu0 0.0
    %740 = vmatprep.subr.mxu0 0.0
    %741 = vmatpush1.msra.mxu0 0.0
    %742 = vmatprep.subr.mxu0 0.0
    %743 = vmatpush1.msra.mxu0 0.0
    %744 = vmatprep.subr.mxu0 0.0
    %745 = vmatpush1.msra.mxu0 0.0
    %746 = vmatprep.subr.mxu0 0.0
    %747 = vmatpush1.msra.mxu0 0.0
    %748 = vmatprep.subr.mxu0 0.0
    %749 = vmatpush1.msra.mxu0 0.0
    %750 = vmatprep.subr.mxu0 0.0
    %751 = vmatpush1.msra.mxu0 0.0
    %752 = vmatprep.subr.mxu0 0.0
    %753 = vmatpush1.msra.mxu0 0.0
    %754 = vmatprep.mubr.f32.mxu0 0.0
    %755 = vmatmul.mubr.f32.gmra.mrb[0].mxu0 %v688
    %v756 = vpop.f32.mrb[0].mxu0
    %v757 = vadd.f32 0.0, %v756
    %v758 = vpop.f32.mrb[0].mxu0
    %v759 = vadd.f32 0.0, %v758
    %760 = vdwg.mxu0
    %v761 = vadd.f32 %v686, %v757
    %v762 = vadd.f32 %v687, %v759
    %v763 = vmul.f32 %v761, 0.5
    %v764 = vtanh.pop %v763
    %v765 = vmul.f32 %v764, 0.5
    %v766 = vadd.f32 %v765, 0.5
    %v767 = vtanh.pop %v762
    %v768 = vmul.f32 %v762, 0.5
    %v769 = vtanh.pop %v768
    %v770 = vmul.f32 %v769, 0.5
    %v771 = vadd.f32 %v770, 0.5
    %v772 = vmul.f32 %v766, %v589
    %v773 = vmul.f32 %v766, %v767
    %775 = vrot.lane.b32.xlu0 %v773, 64
    %v776 = vpop.permute.xlu0 %775
    %v778 = vadd.f32 %v772, %v776
    %v779 = vtanh.pop %v778
    %v780 = vmul.f32 %v771, %v779
    %782 = vrot.lane.b32.xlu0 %v780, 64
    %v783 = vpop.permute.xlu0 %782
    %v785 = vsel %vm308, %v783, %v685
    %786 = vmatprep.subr.mxu0 %v273
    %787 = vmatpush1.msra.mxu0 %v272
    %788 = vmatprep.subr.mxu0 %v275
    %789 = vmatpush1.msra.mxu0 %v274
    %790 = vmatprep.subr.mxu0 %v277
    %791 = vmatpush1.msra.mxu0 %v276
    %792 = vmatprep.subr.mxu0 %v279
    %793 = vmatpush1.msra.mxu0 %v278
    %794 = vmatprep.subr.mxu0 %v281
    %795 = vmatpush1.msra.mxu0 %v280
    %796 = vmatprep.subr.mxu0 %v283
    %797 = vmatpush1.msra.mxu0 %v282
    %798 = vmatprep.subr.mxu0 %v285
    %799 = vmatpush1.msra.mxu0 %v284
    %800 = vmatprep.subr.mxu0 %v287
    %801 = vmatpush1.msra.mxu0 %v286
    %802 = vmatprep.subr.mxu0 %v289
    %803 = vmatpush1.msra.mxu0 %v288
    %804 = vmatprep.subr.mxu0 %v291
    %805 = vmatpush1.msra.mxu0 %v290
    %806 = vmatprep.subr.mxu0 %v293
    %807 = vmatpush1.msra.mxu0 %v292
    %808 = vmatprep.subr.mxu0 %v295
    %809 = vmatpush1.msra.mxu0 %v294
    %810 = vmatprep.subr.mxu0 %v297
    %811 = vmatpush1.msra.mxu0 %v296
    %812 = vmatprep.subr.mxu0 %v299
    %813 = vmatpush1.msra.mxu0 %v298
    %814 = vmatprep.subr.mxu0 %v301
    %815 = vmatpush1.msra.mxu0 %v300
    %816 = vmatprep.subr.mxu0 %v303
    %817 = vmatpush1.msra.mxu0 %v302
    %818 = vmatprep.subr.mxu0 0.0
    %819 = vmatpush1.msra.mxu0 0.0
    %820 = vmatprep.subr.mxu0 0.0
    %821 = vmatpush1.msra.mxu0 0.0
    %822 = vmatprep.subr.mxu0 0.0
    %823 = vmatpush1.msra.mxu0 0.0
    %824 = vmatprep.subr.mxu0 0.0
    %825 = vmatpush1.msra.mxu0 0.0
    %826 = vmatprep.subr.mxu0 0.0
    %827 = vmatpush1.msra.mxu0 0.0
    %828 = vmatprep.subr.mxu0 0.0
    %829 = vmatpush1.msra.mxu0 0.0
    %830 = vmatprep.subr.mxu0 0.0
    %831 = vmatpush1.msra.mxu0 0.0
    %832 = vmatprep.subr.mxu0 0.0
    %833 = vmatpush1.msra.mxu0 0.0
    %834 = vmatprep.subr.mxu0 0.0
    %835 = vmatpush1.msra.mxu0 0.0
    %836 = vmatprep.subr.mxu0 0.0
    %837 = vmatpush1.msra.mxu0 0.0
    %838 = vmatprep.subr.mxu0 0.0
    %839 = vmatpush1.msra.mxu0 0.0
    %840 = vmatprep.subr.mxu0 0.0
    %841 = vmatpush1.msra.mxu0 0.0
    %842 = vmatprep.subr.mxu0 0.0
    %843 = vmatpush1.msra.mxu0 0.0
    %844 = vmatprep.subr.mxu0 0.0
    %845 = vmatpush1.msra.mxu0 0.0
    %846 = vmatprep.subr.mxu0 0.0
    %847 = vmatpush1.msra.mxu0 0.0
    %848 = vmatprep.subr.mxu0 0.0
    %849 = vmatpush1.msra.mxu0 0.0
    %850 = vmatprep.mubr.f32.mxu0 0.0
    %851 = vmatmul.mubr.f32.gmra.mrb[0].mxu0 %v785
    %v852 = vpop.f32.mrb[0].mxu0
    %v853 = vadd.f32 %v304, %v852
    %v854 = vpop.f32.mrb[0].mxu0
    %v855 = vadd.f32 %v305, %v854
    %856 = vdwg.mxu0
    %v857 = vmul.f32 %v853, 0.5
    %v858 = vtanh.pop %v857
    %v859 = vmul.f32 %v858, 0.5
    %v860 = vadd.f32 %v859, 0.5
    %v861 = vtanh.pop %v855
    %v862 = vmul.f32 %v855, 0.5
    %v863 = vtanh.pop %v862
    %v864 = vmul.f32 %v863, 0.5
    %v865 = vadd.f32 %v864, 0.5
    %v866 = vmul.f32 %v860, %v683
    %v867 = vmul.f32 %v860, %v861
    %869 = vrot.lane.b32.xlu0 %v867, 64
    %v870 = vpop.permute.xlu0 %869
    %v872 = vadd.f32 %v866, %v870
    %v873 = vtanh.pop %v872
    %v874 = vmul.f32 %v865, %v873
    %v875 = vld [vmem:[%s241] sm:$0xff]
    %v876 = vld [vmem:[%s241 + $0x8] sm:$0xff]
    %v877 = vsel %vm308, %v783, 0
    %879 = vmatprep.subr.mxu0 %v257
    %880 = vmatpush1.msra.mxu0 %v256
    %881 = vmatprep.subr.mxu0 %v259
    %882 = vmatpush1.msra.mxu0 %v258
    %883 = vmatprep.subr.mxu0 %v261
    %884 = vmatpush1.msra.mxu0 %v260
    %885 = vmatprep.subr.mxu0 %v263
    %886 = vmatpush1.msra.mxu0 %v262
    %887 = vmatprep.subr.mxu0 %v265
    %888 = vmatpush1.msra.mxu0 %v264
    %889 = vmatprep.subr.mxu0 %v267
    %890 = vmatpush1.msra.mxu0 %v266
    %891 = vmatprep.subr.mxu0 %v269
    %892 = vmatpush1.msra.mxu0 %v268
    %893 = vmatprep.subr.mxu0 %v271
    %894 = vmatpush1.msra.mxu0 %v270
    %895 = vmatprep.subr.mxu0 0.0
    %896 = vmatpush1.msra.mxu0 0.0
    %897 = vmatprep.subr.mxu0 0.0
    %898 = vmatpush1.msra.mxu0 0.0
    %899 = vmatprep.subr.mxu0 0.0
    %900 = vmatpush1.msra.mxu0 0.0
    %901 = vmatprep.subr.mxu0 0.0
    %902 = vmatpush1.msra.mxu0 0.0
    %903 = vmatprep.subr.mxu0 0.0
    %904 = vmatpush1.msra.mxu0 0.0
    %905 = vmatprep.subr.mxu0 0.0
    %906 = vmatpush1.msra.mxu0 0.0
    %907 = vmatprep.subr.mxu0 0.0
    %908 = vmatpush1.msra.mxu0 0.0
    %909 = vmatprep.subr.mxu0 0.0
    %910 = vmatpush1.msra.mxu0 0.0
    %911 = vmatprep.subr.mxu0 0.0
    %912 = vmatpush1.msra.mxu0 0.0
    %913 = vmatprep.subr.mxu0 0.0
    %914 = vmatpush1.msra.mxu0 0.0
    %915 = vmatprep.subr.mxu0 0.0
    %916 = vmatpush1.msra.mxu0 0.0
    %917 = vmatprep.subr.mxu0 0.0
    %918 = vmatpush1.msra.mxu0 0.0
    %919 = vmatprep.subr.mxu0 0.0
    %920 = vmatpush1.msra.mxu0 0.0
    %921 = vmatprep.subr.mxu0 0.0
    %922 = vmatpush1.msra.mxu0 0.0
    %923 = vmatprep.subr.mxu0 0.0
    %924 = vmatpush1.msra.mxu0 0.0
    %925 = vmatprep.subr.mxu0 0.0
    %926 = vmatpush1.msra.mxu0 0.0
    %927 = vmatprep.subr.mxu0 0.0
    %928 = vmatpush1.msra.mxu0 0.0
    %929 = vmatprep.subr.mxu0 0.0
    %930 = vmatpush1.msra.mxu0 0.0
    %931 = vmatprep.subr.mxu0 0.0
    %932 = vmatpush1.msra.mxu0 0.0
    %933 = vmatprep.subr.mxu0 0.0
    %934 = vmatpush1.msra.mxu0 0.0
    %935 = vmatprep.subr.mxu0 0.0
    %936 = vmatpush1.msra.mxu0 0.0
    %937 = vmatprep.subr.mxu0 0.0
    %938 = vmatpush1.msra.mxu0 0.0
    %939 = vmatprep.subr.mxu0 0.0
    %940 = vmatpush1.msra.mxu0 0.0
    %941 = vmatprep.subr.mxu0 0.0
    %942 = vmatpush1.msra.mxu0 0.0
    %943 = vmatprep.mubr.f32.mxu0 0.0
    %944 = vmatmul.mubr.f32.gmra.mrb[0].mxu0 %v877
    %v945 = vpop.f32.mrb[0].mxu0
    %v946 = vadd.f32 0.0, %v945
    %v947 = vpop.f32.mrb[0].mxu0
    %v948 = vadd.f32 0.0, %v947
    %949 = vdwg.mxu0
    %v950 = vadd.f32 %v875, %v946
    %v951 = vadd.f32 %v876, %v948
    %v952 = vmul.f32 %v950, 0.5
    %v953 = vtanh.pop %v952
    %v954 = vmul.f32 %v953, 0.5
    %v955 = vadd.f32 %v954, 0.5
    %v956 = vtanh.pop %v951
    %v957 = vmul.f32 %v951, 0.5
    %v958 = vtanh.pop %v957
    %v959 = vmul.f32 %v958, 0.5
    %v960 = vadd.f32 %v959, 0.5
    %v961 = vmul.f32 %v955, %v778
    %v962 = vmul.f32 %v955, %v956
    %964 = vrot.lane.b32.xlu0 %v962, 64
    %v965 = vpop.permute.xlu0 %964
    %v967 = vadd.f32 %v961, %v965
    %v968 = vtanh.pop %v967
    %v969 = vmul.f32 %v960, %v968
    %971 = vrot.lane.b32.xlu0 %v969, 64
    %v972 = vpop.permute.xlu0 %971
    %v974 = vsel %vm308, %v972, %v874
    %975 = vmatprep.subr.mxu0 %v273
    %976 = vmatpush1.msra.mxu0 %v272
    %977 = vmatprep.subr.mxu0 %v275
    %978 = vmatpush1.msra.mxu0 %v274
    %979 = vmatprep.subr.mxu0 %v277
    %980 = vmatpush1.msra.mxu0 %v276
    %981 = vmatprep.subr.mxu0 %v279
    %982 = vmatpush1.msra.mxu0 %v278
    %983 = vmatprep.subr.mxu0 %v281
    %984 = vmatpush1.msra.mxu0 %v280
    %985 = vmatprep.subr.mxu0 %v283
    %986 = vmatpush1.msra.mxu0 %v282
    %987 = vmatprep.subr.mxu0 %v285
    %988 = vmatpush1.msra.mxu0 %v284
    %989 = vmatprep.subr.mxu0 %v287
    %990 = vmatpush1.msra.mxu0 %v286
    %991 = vmatprep.subr.mxu0 %v289
    %992 = vmatpush1.msra.mxu0 %v288
    %993 = vmatprep.subr.mxu0 %v291
    %994 = vmatpush1.msra.mxu0 %v290
    %995 = vmatprep.subr.mxu0 %v293
    %996 = vmatpush1.msra.mxu0 %v292
    %997 = vmatprep.subr.mxu0 %v295
    %998 = vmatpush1.msra.mxu0 %v294
    %999 = vmatprep.subr.mxu0 %v297
    %1000 = vmatpush1.msra.mxu0 %v296
    %1001 = vmatprep.subr.mxu0 %v299
    %1002 = vmatpush1.msra.mxu0 %v298
    %1003 = vmatprep.subr.mxu0 %v301
    %1004 = vmatpush1.msra.mxu0 %v300
    %1005 = vmatprep.subr.mxu0 %v303
    %1006 = vmatpush1.msra.mxu0 %v302
    %1007 = vmatprep.subr.mxu0 0.0
    %1008 = vmatpush1.msra.mxu0 0.0
    %1009 = vmatprep.subr.mxu0 0.0
    %1010 = vmatpush1.msra.mxu0 0.0
    %1011 = vmatprep.subr.mxu0 0.0
    %1012 = vmatpush1.msra.mxu0 0.0
    %1013 = vmatprep.subr.mxu0 0.0
    %1014 = vmatpush1.msra.mxu0 0.0
    %1015 = vmatprep.subr.mxu0 0.0
    %1016 = vmatpush1.msra.mxu0 0.0
    %1017 = vmatprep.subr.mxu0 0.0
    %1018 = vmatpush1.msra.mxu0 0.0
    %1019 = vmatprep.subr.mxu0 0.0
    %1020 = vmatpush1.msra.mxu0 0.0
    %1021 = vmatprep.subr.mxu0 0.0
    %1022 = vmatpush1.msra.mxu0 0.0
    %1023 = vmatprep.subr.mxu0 0.0
    %1024 = vmatpush1.msra.mxu0 0.0
    %1025 = vmatprep.subr.mxu0 0.0
    %1026 = vmatpush1.msra.mxu0 0.0
    %1027 = vmatprep.subr.mxu0 0.0
    %1028 = vmatpush1.msra.mxu0 0.0
    %1029 = vmatprep.subr.mxu0 0.0
    %1030 = vmatpush1.msra.mxu0 0.0
    %1031 = vmatprep.subr.mxu0 0.0
    %1032 = vmatpush1.msra.mxu0 0.0
    %1033 = vmatprep.subr.mxu0 0.0
    %1034 = vmatpush1.msra.mxu0 0.0
    %1035 = vmatprep.subr.mxu0 0.0
    %1036 = vmatpush1.msra.mxu0 0.0
    %1037 = vmatprep.subr.mxu0 0.0
    %1038 = vmatpush1.msra.mxu0 0.0
    %1039 = vmatprep.mubr.f32.mxu0 0.0
    %1040 = vmatmul.mubr.f32.gmra.mrb[0].mxu0 %v974
    %v1041 = vpop.f32.mrb[0].mxu0
    %v1042 = vadd.f32 %v304, %v1041
    %v1043 = vpop.f32.mrb[0].mxu0
    %v1044 = vadd.f32 %v305, %v1043
    %1045 = vdwg.mxu0
    %v1046 = vmul.f32 %v1042, 0.5
    %v1047 = vtanh.pop %v1046
    %v1048 = vmul.f32 %v1047, 0.5
    %v1049 = vadd.f32 %v1048, 0.5
    %v1050 = vtanh.pop %v1044
    %v1051 = vmul.f32 %v1044, 0.5
    %v1052 = vtanh.pop %v1051
    %v1053 = vmul.f32 %v1052, 0.5
    %v1054 = vadd.f32 %v1053, 0.5
    %v1055 = vmul.f32 %v1049, %v872
    %v1056 = vmul.f32 %v1049, %v1050
    %1058 = vrot.lane.b32.xlu0 %v1056, 64
    %v1059 = vpop.permute.xlu0 %1058
    %v1061 = vadd.f32 %v1055, %v1059
    %v1062 = vtanh.pop %v1061
    %v1063 = vmul.f32 %v1054, %v1062
    %v1064 = vld [vmem:[%s244] sm:$0xff]
    %v1065 = vld [vmem:[%s244 + $0x8] sm:$0xff]
    %v1066 = vsel %vm308, %v972, 0
    %1068 = vmatprep.subr.mxu0 %v257
    %1069 = vmatpush1.msra.mxu0 %v256
    %1070 = vmatprep.subr.mxu0 %v259
    %1071 = vmatpush1.msra.mxu0 %v258
    %1072 = vmatprep.subr.mxu0 %v261
    %1073 = vmatpush1.msra.mxu0 %v260
    %1074 = vmatprep.subr.mxu0 %v263
    %1075 = vmatpush1.msra.mxu0 %v262
    %1076 = vmatprep.subr.mxu0 %v265
    %1077 = vmatpush1.msra.mxu0 %v264
    %1078 = vmatprep.subr.mxu0 %v267
    %1079 = vmatpush1.msra.mxu0 %v266
    %1080 = vmatprep.subr.mxu0 %v269
    %1081 = vmatpush1.msra.mxu0 %v268
    %1082 = vmatprep.subr.mxu0 %v271
    %1083 = vmatpush1.msra.mxu0 %v270
    %1084 = vmatprep.subr.mxu0 0.0
    %1085 = vmatpush1.msra.mxu0 0.0
    %1086 = vmatprep.subr.mxu0 0.0
    %1087 = vmatpush1.msra.mxu0 0.0
    %1088 = vmatprep.subr.mxu0 0.0
    %1089 = vmatpush1.msra.mxu0 0.0
    %1090 = vmatprep.subr.mxu0 0.0
    %1091 = vmatpush1.msra.mxu0 0.0
    %1092 = vmatprep.subr.mxu0 0.0
    %1093 = vmatpush1.msra.mxu0 0.0
    %1094 = vmatprep.subr.mxu0 0.0
    %1095 = vmatpush1.msra.mxu0 0.0
    %1096 = vmatprep.subr.mxu0 0.0
    %1097 = vmatpush1.msra.mxu0 0.0
    %1098 = vmatprep.subr.mxu0 0.0
    %1099 = vmatpush1.msra.mxu0 0.0
    %1100 = vmatprep.subr.mxu0 0.0
    %1101 = vmatpush1.msra.mxu0 0.0
    %1102 = vmatprep.subr.mxu0 0.0
    %1103 = vmatpush1.msra.mxu0 0.0
    %1104 = vmatprep.subr.mxu0 0.0
    %1105 = vmatpush1.msra.mxu0 0.0
    %1106 = vmatprep.subr.mxu0 0.0
    %1107 = vmatpush1.msra.mxu0 0.0
    %1108 = vmatprep.subr.mxu0 0.0
    %1109 = vmatpush1.msra.mxu0 0.0
    %1110 = vmatprep.subr.mxu0 0.0
    %1111 = vmatpush1.msra.mxu0 0.0
    %1112 = vmatprep.subr.mxu0 0.0
    %1113 = vmatpush1.msra.mxu0 0.0
    %1114 = vmatprep.subr.mxu0 0.0
    %1115 = vmatpush1.msra.mxu0 0.0
    %1116 = vmatprep.subr.mxu0 0.0
    %1117 = vmatpush1.msra.mxu0 0.0
    %1118 = vmatprep.subr.mxu0 0.0
    %1119 = vmatpush1.msra.mxu0 0.0
    %1120 = vmatprep.subr.mxu0 0.0
    %1121 = vmatpush1.msra.mxu0 0.0
    %1122 = vmatprep.subr.mxu0 0.0
    %1123 = vmatpush1.msra.mxu0 0.0
    %1124 = vmatprep.subr.mxu0 0.0
    %1125 = vmatpush1.msra.mxu0 0.0
    %1126 = vmatprep.subr.mxu0 0.0
    %1127 = vmatpush1.msra.mxu0 0.0
    %1128 = vmatprep.subr.mxu0 0.0
    %1129 = vmatpush1.msra.mxu0 0.0
    %1130 = vmatprep.subr.mxu0 0.0
    %1131 = vmatpush1.msra.mxu0 0.0
    %1132 = vmatprep.mubr.f32.mxu0 0.0
    %1133 = vmatmul.mubr.f32.gmra.mrb[0].mxu0 %v1066
    %v1134 = vpop.f32.mrb[0].mxu0
    %v1135 = vadd.f32 0.0, %v1134
    %v1136 = vpop.f32.mrb[0].mxu0
    %v1137 = vadd.f32 0.0, %v1136
    %1138 = vdwg.mxu0
    %v1139 = vadd.f32 %v1064, %v1135
    %v1140 = vadd.f32 %v1065, %v1137
    %v1141 = vmul.f32 %v1139, 0.5
    %v1142 = vtanh.pop %v1141
    %v1143 = vmul.f32 %v1142, 0.5
    %v1144 = vadd.f32 %v1143, 0.5
    %v1145 = vtanh.pop %v1140
    %v1146 = vmul.f32 %v1140, 0.5
    %v1147 = vtanh.pop %v1146
    %v1148 = vmul.f32 %v1147, 0.5
    %v1149 = vadd.f32 %v1148, 0.5
    %v1150 = vmul.f32 %v1144, %v967
    %v1151 = vmul.f32 %v1144, %v1145
    %1153 = vrot.lane.b32.xlu0 %v1151, 64
    %v1154 = vpop.permute.xlu0 %1153
    %v1156 = vadd.f32 %v1150, %v1154
    %v1157 = vtanh.pop %v1156
    %v1158 = vmul.f32 %v1149, %v1157
    %1160 = vrot.lane.b32.xlu0 %v1158, 64
    %v1161 = vpop.permute.xlu0 %1160
    %v1163 = vsel %vm308, %v1161, %v1063
    %1164 = vmatprep.subr.mxu0 %v273
    %1165 = vmatpush1.msra.mxu0 %v272
    %1166 = vmatprep.subr.mxu0 %v275
    %1167 = vmatpush1.msra.mxu0 %v274
    %1168 = vmatprep.subr.mxu0 %v277
    %1169 = vmatpush1.msra.mxu0 %v276
    %1170 = vmatprep.subr.mxu0 %v279
    %1171 = vmatpush1.msra.mxu0 %v278
    %1172 = vmatprep.subr.mxu0 %v281
    %1173 = vmatpush1.msra.mxu0 %v280
    %1174 = vmatprep.subr.mxu0 %v283
    %1175 = vmatpush1.msra.mxu0 %v282
    %1176 = vmatprep.subr.mxu0 %v285
    %1177 = vmatpush1.msra.mxu0 %v284
    %1178 = vmatprep.subr.mxu0 %v287
    %1179 = vmatpush1.msra.mxu0 %v286
    %1180 = vmatprep.subr.mxu0 %v289
    %1181 = vmatpush1.msra.mxu0 %v288
    %1182 = vmatprep.subr.mxu0 %v291
    %1183 = vmatpush1.msra.mxu0 %v290
    %1184 = vmatprep.subr.mxu0 %v293
    %1185 = vmatpush1.msra.mxu0 %v292
    %1186 = vmatprep.subr.mxu0 %v295
    %1187 = vmatpush1.msra.mxu0 %v294
    %1188 = vmatprep.subr.mxu0 %v297
    %1189 = vmatpush1.msra.mxu0 %v296
    %1190 = vmatprep.subr.mxu0 %v299
    %1191 = vmatpush1.msra.mxu0 %v298
    %1192 = vmatprep.subr.mxu0 %v301
    %1193 = vmatpush1.msra.mxu0 %v300
    %1194 = vmatprep.subr.mxu0 %v303
    %1195 = vmatpush1.msra.mxu0 %v302
    %1196 = vmatprep.subr.mxu0 0.0
    %1197 = vmatpush1.msra.mxu0 0.0
    %1198 = vmatprep.subr.mxu0 0.0
    %1199 = vmatpush1.msra.mxu0 0.0
    %1200 = vmatprep.subr.mxu0 0.0
    %1201 = vmatpush1.msra.mxu0 0.0
    %1202 = vmatprep.subr.mxu0 0.0
    %1203 = vmatpush1.msra.mxu0 0.0
    %1204 = vmatprep.subr.mxu0 0.0
    %1205 = vmatpush1.msra.mxu0 0.0
    %1206 = vmatprep.subr.mxu0 0.0
    %1207 = vmatpush1.msra.mxu0 0.0
    %1208 = vmatprep.subr.mxu0 0.0
    %1209 = vmatpush1.msra.mxu0 0.0
    %1210 = vmatprep.subr.mxu0 0.0
    %1211 = vmatpush1.msra.mxu0 0.0
    %1212 = vmatprep.subr.mxu0 0.0
    %1213 = vmatpush1.msra.mxu0 0.0
    %1214 = vmatprep.subr.mxu0 0.0
    %1215 = vmatpush1.msra.mxu0 0.0
    %1216 = vmatprep.subr.mxu0 0.0
    %1217 = vmatpush1.msra.mxu0 0.0
    %1218 = vmatprep.subr.mxu0 0.0
    %1219 = vmatpush1.msra.mxu0 0.0
    %1220 = vmatprep.subr.mxu0 0.0
    %1221 = vmatpush1.msra.mxu0 0.0
    %1222 = vmatprep.subr.mxu0 0.0
    %1223 = vmatpush1.msra.mxu0 0.0
    %1224 = vmatprep.subr.mxu0 0.0
    %1225 = vmatpush1.msra.mxu0 0.0
    %1226 = vmatprep.subr.mxu0 0.0
    %1227 = vmatpush1.msra.mxu0 0.0
    %1228 = vmatprep.mubr.f32.mxu0 0.0
    %1229 = vmatmul.mubr.f32.gmra.mrb[0].mxu0 %v1163
    %v1230 = vpop.f32.mrb[0].mxu0
    %v1231 = vadd.f32 %v304, %v1230
    %v1232 = vpop.f32.mrb[0].mxu0
    %v1233 = vadd.f32 %v305, %v1232
    %1234 = vdwg.mxu0
    %v1235 = vmul.f32 %v1231, 0.5
    %v1236 = vtanh.pop %v1235
    %v1237 = vmul.f32 %v1236, 0.5
    %v1238 = vadd.f32 %v1237, 0.5
    %v1239 = vtanh.pop %v1233
    %v1240 = vmul.f32 %v1233, 0.5
    %v1241 = vtanh.pop %v1240
    %v1242 = vmul.f32 %v1241, 0.5
    %v1243 = vadd.f32 %v1242, 0.5
    %v1244 = vmul.f32 %v1238, %v1061
    %v1245 = vmul.f32 %v1238, %v1239
    %1247 = vrot.lane.b32.xlu0 %v1245, 64
    %v1248 = vpop.permute.xlu0 %1247
    %v1250 = vadd.f32 %v1244, %v1248
    %v1251 = vtanh.pop %v1250
    %v1252 = vmul.f32 %v1243, %v1251
    %v1253 = vld [vmem:[%s247] sm:$0xff]
    %v1254 = vld [vmem:[%s247 + $0x8] sm:$0xff]
    %v1255 = vsel %vm308, %v1161, 0
    %1257 = vmatprep.subr.mxu0 %v257
    %1258 = vmatpush1.msra.mxu0 %v256
    %1259 = vmatprep.subr.mxu0 %v259
    %1260 = vmatpush1.msra.mxu0 %v258
    %1261 = vmatprep.subr.mxu0 %v261
    %1262 = vmatpush1.msra.mxu0 %v260
    %1263 = vmatprep.subr.mxu0 %v263
    %1264 = vmatpush1.msra.mxu0 %v262
    %1265 = vmatprep.subr.mxu0 %v265
    %1266 = vmatpush1.msra.mxu0 %v264
    %1267 = vmatprep.subr.mxu0 %v267
    %1268 = vmatpush1.msra.mxu0 %v266
    %1269 = vmatprep.subr.mxu0 %v269
    %1270 = vmatpush1.msra.mxu0 %v268
    %1271 = vmatprep.subr.mxu0 %v271
    %1272 = vmatpush1.msra.mxu0 %v270
    %1273 = vmatprep.subr.mxu0 0.0
    %1274 = vmatpush1.msra.mxu0 0.0
    %1275 = vmatprep.subr.mxu0 0.0
    %1276 = vmatpush1.msra.mxu0 0.0
    %1277 = vmatprep.subr.mxu0 0.0
    %1278 = vmatpush1.msra.mxu0 0.0
    %1279 = vmatprep.subr.mxu0 0.0
    %1280 = vmatpush1.msra.mxu0 0.0
    %1281 = vmatprep.subr.mxu0 0.0
    %1282 = vmatpush1.msra.mxu0 0.0
    %1283 = vmatprep.subr.mxu0 0.0
    %1284 = vmatpush1.msra.mxu0 0.0
    %1285 = vmatprep.subr.mxu0 0.0
    %1286 = vmatpush1.msra.mxu0 0.0
    %1287 = vmatprep.subr.mxu0 0.0
    %1288 = vmatpush1.msra.mxu0 0.0
    %1289 = vmatprep.subr.mxu0 0.0
    %1290 = vmatpush1.msra.mxu0 0.0
    %1291 = vmatprep.subr.mxu0 0.0
    %1292 = vmatpush1.msra.mxu0 0.0
    %1293 = vmatprep.subr.mxu0 0.0
    %1294 = vmatpush1.msra.mxu0 0.0
    %1295 = vmatprep.subr.mxu0 0.0
    %1296 = vmatpush1.msra.mxu0 0.0
    %1297 = vmatprep.subr.mxu0 0.0
    %1298 = vmatpush1.msra.mxu0 0.0
    %1299 = vmatprep.subr.mxu0 0.0
    %1300 = vmatpush1.msra.mxu0 0.0
    %1301 = vmatprep.subr.mxu0 0.0
    %1302 = vmatpush1.msra.mxu0 0.0
    %1303 = vmatprep.subr.mxu0 0.0
    %1304 = vmatpush1.msra.mxu0 0.0
    %1305 = vmatprep.subr.mxu0 0.0
    %1306 = vmatpush1.msra.mxu0 0.0
    %1307 = vmatprep.subr.mxu0 0.0
    %1308 = vmatpush1.msra.mxu0 0.0
    %1309 = vmatprep.subr.mxu0 0.0
    %1310 = vmatpush1.msra.mxu0 0.0
    %1311 = vmatprep.subr.mxu0 0.0
    %1312 = vmatpush1.msra.mxu0 0.0
    %1313 = vmatprep.subr.mxu0 0.0
    %1314 = vmatpush1.msra.mxu0 0.0
    %1315 = vmatprep.subr.mxu0 0.0
    %1316 = vmatpush1.msra.mxu0 0.0
    %1317 = vmatprep.subr.mxu0 0.0
    %1318 = vmatpush1.msra.mxu0 0.0
    %1319 = vmatprep.subr.mxu0 0.0
    %1320 = vmatpush1.msra.mxu0 0.0
    %1321 = vmatprep.mubr.f32.mxu0 0.0
    %1322 = vmatmul.mubr.f32.gmra.mrb[0].mxu0 %v1255
    %v1323 = vpop.f32.mrb[0].mxu0
    %v1324 = vadd.f32 0.0, %v1323
    %v1325 = vpop.f32.mrb[0].mxu0
    %v1326 = vadd.f32 0.0, %v1325
    %1327 = vdwg.mxu0
    %v1328 = vadd.f32 %v1253, %v1324
    %v1329 = vadd.f32 %v1254, %v1326
    %v1330 = vmul.f32 %v1328, 0.5
    %v1331 = vtanh.pop %v1330
    %v1332 = vmul.f32 %v1331, 0.5
    %v1333 = vadd.f32 %v1332, 0.5
    %v1334 = vtanh.pop %v1329
    %v1335 = vmul.f32 %v1329, 0.5
    %v1336 = vtanh.pop %v1335
    %v1337 = vmul.f32 %v1336, 0.5
    %v1338 = vadd.f32 %v1337, 0.5
    %v1339 = vmul.f32 %v1333, %v1156
    %v1340 = vmul.f32 %v1333, %v1334
    %1342 = vrot.lane.b32.xlu0 %v1340, 64
    %v1343 = vpop.permute.xlu0 %1342
    %v1345 = vadd.f32 %v1339, %v1343
    %v1346 = vtanh.pop %v1345
    %v1347 = vmul.f32 %v1338, %v1346
    %1349 = vrot.lane.b32.xlu0 %v1347, 64
    %v1350 = vpop.permute.xlu0 %1349
    %v1352 = vsel %vm308, %v1350, %v1252
    %1353 = vmatprep.subr.mxu0 %v273
    %1354 = vmatpush1.msra.mxu0 %v272
    %1355 = vmatprep.subr.mxu0 %v275
    %1356 = vmatpush1.msra.mxu0 %v274
    %1357 = vmatprep.subr.mxu0 %v277
    %1358 = vmatpush1.msra.mxu0 %v276
    %1359 = vmatprep.subr.mxu0 %v279
    %1360 = vmatpush1.msra.mxu0 %v278
    %1361 = vmatprep.subr.mxu0 %v281
    %1362 = vmatpush1.msra.mxu0 %v280
    %1363 = vmatprep.subr.mxu0 %v283
    %1364 = vmatpush1.msra.mxu0 %v282
    %1365 = vmatprep.subr.mxu0 %v285
    %1366 = vmatpush1.msra.mxu0 %v284
    %1367 = vmatprep.subr.mxu0 %v287
    %1368 = vmatpush1.msra.mxu0 %v286
    %1369 = vmatprep.subr.mxu0 %v289
    %1370 = vmatpush1.msra.mxu0 %v288
    %1371 = vmatprep.subr.mxu0 %v291
    %1372 = vmatpush1.msra.mxu0 %v290
    %1373 = vmatprep.subr.mxu0 %v293
    %1374 = vmatpush1.msra.mxu0 %v292
    %1375 = vmatprep.subr.mxu0 %v295
    %1376 = vmatpush1.msra.mxu0 %v294
    %1377 = vmatprep.subr.mxu0 %v297
    %1378 = vmatpush1.msra.mxu0 %v296
    %1379 = vmatprep.subr.mxu0 %v299
    %1380 = vmatpush1.msra.mxu0 %v298
    %1381 = vmatprep.subr.mxu0 %v301
    %1382 = vmatpush1.msra.mxu0 %v300
    %1383 = vmatprep.subr.mxu0 %v303
    %1384 = vmatpush1.msra.mxu0 %v302
    %1385 = vmatprep.subr.mxu0 0.0
    %1386 = vmatpush1.msra.mxu0 0.0
    %1387 = vmatprep.subr.mxu0 0.0
    %1388 = vmatpush1.msra.mxu0 0.0
    %1389 = vmatprep.subr.mxu0 0.0
    %1390 = vmatpush1.msra.mxu0 0.0
    %1391 = vmatprep.subr.mxu0 0.0
    %1392 = vmatpush1.msra.mxu0 0.0
    %1393 = vmatprep.subr.mxu0 0.0
    %1394 = vmatpush1.msra.mxu0 0.0
    %1395 = vmatprep.subr.mxu0 0.0
    %1396 = vmatpush1.msra.mxu0 0.0
    %1397 = vmatprep.subr.mxu0 0.0
    %1398 = vmatpush1.msra.mxu0 0.0
    %1399 = vmatprep.subr.mxu0 0.0
    %1400 = vmatpush1.msra.mxu0 0.0
    %1401 = vmatprep.subr.mxu0 0.0
    %1402 = vmatpush1.msra.mxu0 0.0
    %1403 = vmatprep.subr.mxu0 0.0
    %1404 = vmatpush1.msra.mxu0 0.0
    %1405 = vmatprep.subr.mxu0 0.0
    %1406 = vmatpush1.msra.mxu0 0.0
    %1407 = vmatprep.subr.mxu0 0.0
    %1408 = vmatpush1.msra.mxu0 0.0
    %1409 = vmatprep.subr.mxu0 0.0
    %1410 = vmatpush1.msra.mxu0 0.0
    %1411 = vmatprep.subr.mxu0 0.0
    %1412 = vmatpush1.msra.mxu0 0.0
    %1413 = vmatprep.subr.mxu0 0.0
    %1414 = vmatpush1.msra.mxu0 0.0
    %1415 = vmatprep.subr.mxu0 0.0
    %1416 = vmatpush1.msra.mxu0 0.0
    %1417 = vmatprep.mubr.f32.mxu0 0.0
    %1418 = vmatmul.mubr.f32.gmra.mrb[0].mxu0 %v1352
    %v1419 = vpop.f32.mrb[0].mxu0
    %v1420 = vadd.f32 %v304, %v1419
    %v1421 = vpop.f32.mrb[0].mxu0
    %v1422 = vadd.f32 %v305, %v1421
    %1423 = vdwg.mxu0
    %v1424 = vmul.f32 %v1420, 0.5
    %v1425 = vtanh.pop %v1424
    %v1426 = vmul.f32 %v1425, 0.5
    %v1427 = vadd.f32 %v1426, 0.5
    %v1428 = vtanh.pop %v1422
    %v1429 = vmul.f32 %v1422, 0.5
    %v1430 = vtanh.pop %v1429
    %v1431 = vmul.f32 %v1430, 0.5
    %v1432 = vadd.f32 %v1431, 0.5
    %v1433 = vmul.f32 %v1427, %v1250
    %v1434 = vmul.f32 %v1427, %v1428
    %1436 = vrot.lane.b32.xlu0 %v1434, 64
    %v1437 = vpop.permute.xlu0 %1436
    %v1439 = vadd.f32 %v1433, %v1437
    %v1440 = vtanh.pop %v1439
    %v1441 = vmul.f32 %v1432, %v1440
    %v1442 = vld [vmem:[%s250] sm:$0xff]
    %v1443 = vld [vmem:[%s250 + $0x8] sm:$0xff]
    %v1444 = vsel %vm308, %v1350, 0
    %1446 = vmatprep.subr.mxu0 %v257
    %1447 = vmatpush1.msra.mxu0 %v256
    %1448 = vmatprep.subr.mxu0 %v259
    %1449 = vmatpush1.msra.mxu0 %v258
    %1450 = vmatprep.subr.mxu0 %v261
    %1451 = vmatpush1.msra.mxu0 %v260
    %1452 = vmatprep.subr.mxu0 %v263
    %1453 = vmatpush1.msra.mxu0 %v262
    %1454 = vmatprep.subr.mxu0 %v265
    %1455 = vmatpush1.msra.mxu0 %v264
    %1456 = vmatprep.subr.mxu0 %v267
    %1457 = vmatpush1.msra.mxu0 %v266
    %1458 = vmatprep.subr.mxu0 %v269
    %1459 = vmatpush1.msra.mxu0 %v268
    %1460 = vmatprep.subr.mxu0 %v271
    %1461 = vmatpush1.msra.mxu0 %v270
    %1462 = vmatprep.subr.mxu0 0.0
    %1463 = vmatpush1.msra.mxu0 0.0
    %1464 = vmatprep.subr.mxu0 0.0
    %1465 = vmatpush1.msra.mxu0 0.0
    %1466 = vmatprep.subr.mxu0 0.0
    %1467 = vmatpush1.msra.mxu0 0.0
    %1468 = vmatprep.subr.mxu0 0.0
    %1469 = vmatpush1.msra.mxu0 0.0
    %1470 = vmatprep.subr.mxu0 0.0
    %1471 = vmatpush1.msra.mxu0 0.0
    %1472 = vmatprep.subr.mxu0 0.0
    %1473 = vmatpush1.msra.mxu0 0.0
    %1474 = vmatprep.subr.mxu0 0.0
    %1475 = vmatpush1.msra.mxu0 0.0
    %1476 = vmatprep.subr.mxu0 0.0
    %1477 = vmatpush1.msra.mxu0 0.0
    %1478 = vmatprep.subr.mxu0 0.0
    %1479 = vmatpush1.msra.mxu0 0.0
    %1480 = vmatprep.subr.mxu0 0.0
    %1481 = vmatpush1.msra.mxu0 0.0
    %1482 = vmatprep.subr.mxu0 0.0
    %1483 = vmatpush1.msra.mxu0 0.0
    %1484 = vmatprep.subr.mxu0 0.0
    %1485 = vmatpush1.msra.mxu0 0.0
    %1486 = vmatprep.subr.mxu0 0.0
    %1487 = vmatpush1.msra.mxu0 0.0
    %1488 = vmatprep.subr.mxu0 0.0
    %1489 = vmatpush1.msra.mxu0 0.0
    %1490 = vmatprep.subr.mxu0 0.0
    %1491 = vmatpush1.msra.mxu0 0.0
    %1492 = vmatprep.subr.mxu0 0.0
    %1493 = vmatpush1.msra.mxu0 0.0
    %1494 = vmatprep.subr.mxu0 0.0
    %1495 = vmatpush1.msra.mxu0 0.0
    %1496 = vmatprep.subr.mxu0 0.0
    %1497 = vmatpush1.msra.mxu0 0.0
    %1498 = vmatprep.subr.mxu0 0.0
    %1499 = vmatpush1.msra.mxu0 0.0
    %1500 = vmatprep.subr.mxu0 0.0
    %1501 = vmatpush1.msra.mxu0 0.0
    %1502 = vmatprep.subr.mxu0 0.0
    %1503 = vmatpush1.msra.mxu0 0.0
    %1504 = vmatprep.subr.mxu0 0.0
    %1505 = vmatpush1.msra.mxu0 0.0
    %1506 = vmatprep.subr.mxu0 0.0
    %1507 = vmatpush1.msra.mxu0 0.0
    %1508 = vmatprep.subr.mxu0 0.0
    %1509 = vmatpush1.msra.mxu0 0.0
    %1510 = vmatprep.mubr.f32.mxu0 0.0
    %1511 = vmatmul.mubr.f32.gmra.mrb[0].mxu0 %v1444
    %v1512 = vpop.f32.mrb[0].mxu0
    %v1513 = vadd.f32 0.0, %v1512
    %v1514 = vpop.f32.mrb[0].mxu0
    %v1515 = vadd.f32 0.0, %v1514
    %1516 = vdwg.mxu0
    %v1517 = vadd.f32 %v1442, %v1513
    %v1518 = vadd.f32 %v1443, %v1515
    %v1519 = vmul.f32 %v1517, 0.5
    %v1520 = vtanh.pop %v1519
    %v1521 = vmul.f32 %v1520, 0.5
    %v1522 = vadd.f32 %v1521, 0.5
    %v1523 = vtanh.pop %v1518
    %v1524 = vmul.f32 %v1518, 0.5
    %v1525 = vtanh.pop %v1524
    %v1526 = vmul.f32 %v1525, 0.5
    %v1527 = vadd.f32 %v1526, 0.5
    %v1528 = vmul.f32 %v1522, %v1345
    %v1529 = vmul.f32 %v1522, %v1523
    %1531 = vrot.lane.b32.xlu0 %v1529, 64
    %v1532 = vpop.permute.xlu0 %1531
    %v1534 = vadd.f32 %v1528, %v1532
    %v1535 = vtanh.pop %v1534
    %v1536 = vmul.f32 %v1527, %v1535
    %1538 = vrot.lane.b32.xlu0 %v1536, 64
    %v1539 = vpop.permute.xlu0 %1538
    %v1541 = vsel %vm308, %v1539, %v1441
    %1542 = vmatprep.subr.mxu0 %v273
    %1543 = vmatpush1.msra.mxu0 %v272
    %1544 = vmatprep.subr.mxu0 %v275
    %1545 = vmatpush1.msra.mxu0 %v274
    %1546 = vmatprep.subr.mxu0 %v277
    %1547 = vmatpush1.msra.mxu0 %v276
    %1548 = vmatprep.subr.mxu0 %v279
    %1549 = vmatpush1.msra.mxu0 %v278
    %1550 = vmatprep.subr.mxu0 %v281
    %1551 = vmatpush1.msra.mxu0 %v280
    %1552 = vmatprep.subr.mxu0 %v283
    %1553 = vmatpush1.msra.mxu0 %v282
    %1554 = vmatprep.subr.mxu0 %v285
    %1555 = vmatpush1.msra.mxu0 %v284
    %1556 = vmatprep.subr.mxu0 %v287
    %1557 = vmatpush1.msra.mxu0 %v286
    %1558 = vmatprep.subr.mxu0 %v289
    %1559 = vmatpush1.msra.mxu0 %v288
    %1560 = vmatprep.subr.mxu0 %v291
    %1561 = vmatpush1.msra.mxu0 %v290
    %1562 = vmatprep.subr.mxu0 %v293
    %1563 = vmatpush1.msra.mxu0 %v292
    %1564 = vmatprep.subr.mxu0 %v295
    %1565 = vmatpush1.msra.mxu0 %v294
    %1566 = vmatprep.subr.mxu0 %v297
    %1567 = vmatpush1.msra.mxu0 %v296
    %1568 = vmatprep.subr.mxu0 %v299
    %1569 = vmatpush1.msra.mxu0 %v298
    %1570 = vmatprep.subr.mxu0 %v301
    %1571 = vmatpush1.msra.mxu0 %v300
    %1572 = vmatprep.subr.mxu0 %v303
    %1573 = vmatpush1.msra.mxu0 %v302
    %1574 = vmatprep.subr.mxu0 0.0
    %1575 = vmatpush1.msra.mxu0 0.0
    %1576 = vmatprep.subr.mxu0 0.0
    %1577 = vmatpush1.msra.mxu0 0.0
    %1578 = vmatprep.subr.mxu0 0.0
    %1579 = vmatpush1.msra.mxu0 0.0
    %1580 = vmatprep.subr.mxu0 0.0
    %1581 = vmatpush1.msra.mxu0 0.0
    %1582 = vmatprep.subr.mxu0 0.0
    %1583 = vmatpush1.msra.mxu0 0.0
    %1584 = vmatprep.subr.mxu0 0.0
    %1585 = vmatpush1.msra.mxu0 0.0
    %1586 = vmatprep.subr.mxu0 0.0
    %1587 = vmatpush1.msra.mxu0 0.0
    %1588 = vmatprep.subr.mxu0 0.0
    %1589 = vmatpush1.msra.mxu0 0.0
    %1590 = vmatprep.subr.mxu0 0.0
    %1591 = vmatpush1.msra.mxu0 0.0
    %1592 = vmatprep.subr.mxu0 0.0
    %1593 = vmatpush1.msra.mxu0 0.0
    %1594 = vmatprep.subr.mxu0 0.0
    %1595 = vmatpush1.msra.mxu0 0.0
    %1596 = vmatprep.subr.mxu0 0.0
    %1597 = vmatpush1.msra.mxu0 0.0
    %1598 = vmatprep.subr.mxu0 0.0
    %1599 = vmatpush1.msra.mxu0 0.0
    %1600 = vmatprep.subr.mxu0 0.0
    %1601 = vmatpush1.msra.mxu0 0.0
    %1602 = vmatprep.subr.mxu0 0.0
    %1603 = vmatpush1.msra.mxu0 0.0
    %1604 = vmatprep.subr.mxu0 0.0
    %1605 = vmatpush1.msra.mxu0 0.0
    %1606 = vmatprep.mubr.f32.mxu0 0.0
    %1607 = vmatmul.mubr.f32.gmra.mrb[0].mxu0 %v1541
    %v1608 = vpop.f32.mrb[0].mxu0
    %v1609 = vadd.f32 %v304, %v1608
    %v1610 = vpop.f32.mrb[0].mxu0
    %v1611 = vadd.f32 %v305, %v1610
    %1612 = vdwg.mxu0
    %v1613 = vmul.f32 %v1609, 0.5
    %v1614 = vtanh.pop %v1613
    %v1615 = vmul.f32 %v1614, 0.5
    %v1616 = vadd.f32 %v1615, 0.5
    %v1617 = vtanh.pop %v1611
    %v1618 = vmul.f32 %v1611, 0.5
    %v1619 = vtanh.pop %v1618
    %v1620 = vmul.f32 %v1619, 0.5
    %v1621 = vadd.f32 %v1620, 0.5
    %v1622 = vmul.f32 %v1616, %v1439
    %v1623 = vmul.f32 %v1616, %v1617
    %1625 = vrot.lane.b32.xlu0 %v1623, 64
    %v1626 = vpop.permute.xlu0 %1625
    %v1628 = vadd.f32 %v1622, %v1626
    %v1629 = vtanh.pop %v1628
    %v1630 = vmul.f32 %v1621, %v1629
    %v1631 = vld [vmem:[%s253] sm:$0xff]
    %v1632 = vld [vmem:[%s253 + $0x8] sm:$0xff]
    %v1633 = vsel %vm308, %v1539, 0
    %1635 = vmatprep.subr.mxu0 %v257
    %1636 = vmatpush1.msra.mxu0 %v256
    %1637 = vmatprep.subr.mxu0 %v259
    %1638 = vmatpush1.msra.mxu0 %v258
    %1639 = vmatprep.subr.mxu0 %v261
    %1640 = vmatpush1.msra.mxu0 %v260
    %1641 = vmatprep.subr.mxu0 %v263
    %1642 = vmatpush1.msra.mxu0 %v262
    %1643 = vmatprep.subr.mxu0 %v265
    %1644 = vmatpush1.msra.mxu0 %v264
    %1645 = vmatprep.subr.mxu0 %v267
    %1646 = vmatpush1.msra.mxu0 %v266
    %1647 = vmatprep.subr.mxu0 %v269
    %1648 = vmatpush1.msra.mxu0 %v268
    %1649 = vmatprep.subr.mxu0 %v271
    %1650 = vmatpush1.msra.mxu0 %v270
    %1651 = vmatprep.subr.mxu0 0.0
    %1652 = vmatpush1.msra.mxu0 0.0
    %1653 = vmatprep.subr.mxu0 0.0
    %1654 = vmatpush1.msra.mxu0 0.0
    %1655 = vmatprep.subr.mxu0 0.0
    %1656 = vmatpush1.msra.mxu0 0.0
    %1657 = vmatprep.subr.mxu0 0.0
    %1658 = vmatpush1.msra.mxu0 0.0
    %1659 = vmatprep.subr.mxu0 0.0
    %1660 = vmatpush1.msra.mxu0 0.0
    %1661 = vmatprep.subr.mxu0 0.0
    %1662 = vmatpush1.msra.mxu0 0.0
    %1663 = vmatprep.subr.mxu0 0.0
    %1664 = vmatpush1.msra.mxu0 0.0
    %1665 = vmatprep.subr.mxu0 0.0
    %1666 = vmatpush1.msra.mxu0 0.0
    %1667 = vmatprep.subr.mxu0 0.0
    %1668 = vmatpush1.msra.mxu0 0.0
    %1669 = vmatprep.subr.mxu0 0.0
    %1670 = vmatpush1.msra.mxu0 0.0
    %1671 = vmatprep.subr.mxu0 0.0
    %1672 = vmatpush1.msra.mxu0 0.0
    %1673 = vmatprep.subr.mxu0 0.0
    %1674 = vmatpush1.msra.mxu0 0.0
    %1675 = vmatprep.subr.mxu0 0.0
    %1676 = vmatpush1.msra.mxu0 0.0
    %1677 = vmatprep.subr.mxu0 0.0
    %1678 = vmatpush1.msra.mxu0 0.0
    %1679 = vmatprep.subr.mxu0 0.0
    %1680 = vmatpush1.msra.mxu0 0.0
    %1681 = vmatprep.subr.mxu0 0.0
    %1682 = vmatpush1.msra.mxu0 0.0
    %1683 = vmatprep.subr.mxu0 0.0
    %1684 = vmatpush1.msra.mxu0 0.0
    %1685 = vmatprep.subr.mxu0 0.0
    %1686 = vmatpush1.msra.mxu0 0.0
    %1687 = vmatprep.subr.mxu0 0.0
    %1688 = vmatpush1.msra.mxu0 0.0
    %1689 = vmatprep.subr.mxu0 0.0
    %1690 = vmatpush1.msra.mxu0 0.0
    %1691 = vmatprep.subr.mxu0 0.0
    %1692 = vmatpush1.msra.mxu0 0.0
    %1693 = vmatprep.subr.mxu0 0.0
    %1694 = vmatpush1.msra.mxu0 0.0
    %1695 = vmatprep.subr.mxu0 0.0
    %1696 = vmatpush1.msra.mxu0 0.0
    %1697 = vmatprep.subr.mxu0 0.0
    %1698 = vmatpush1.msra.mxu0 0.0
    %1699 = vmatprep.mubr.f32.mxu0 0.0
    %1700 = vmatmul.mubr.f32.gmra.mrb[0].mxu0 %v1633
    %v1701 = vpop.f32.mrb[0].mxu0
    %v1702 = vadd.f32 0.0, %v1701
    %v1703 = vpop.f32.mrb[0].mxu0
    %v1704 = vadd.f32 0.0, %v1703
    %1705 = vdwg.mxu0
    %v1706 = vadd.f32 %v1631, %v1702
    %v1707 = vadd.f32 %v1632, %v1704
    %v1708 = vmul.f32 %v1706, 0.5
    %v1709 = vtanh.pop %v1708
    %v1710 = vmul.f32 %v1709, 0.5
    %v1711 = vadd.f32 %v1710, 0.5
    %v1712 = vtanh.pop %v1707
    %v1713 = vmul.f32 %v1707, 0.5
    %v1714 = vtanh.pop %v1713
    %v1715 = vmul.f32 %v1714, 0.5
    %v1716 = vadd.f32 %v1715, 0.5
    %v1717 = vmul.f32 %v1711, %v1534
    %v1718 = vmul.f32 %v1711, %v1712
    %1720 = vrot.lane.b32.xlu0 %v1718, 64
    %v1721 = vpop.permute.xlu0 %1720
    %v1723 = vadd.f32 %v1717, %v1721
    %v1724 = vtanh.pop %v1723
    %v1725 = vmul.f32 %v1716, %v1724
    %1727 = vrot.lane.b32.xlu0 %v1725, 64
    %v1728 = vpop.permute.xlu0 %1727
    %v1730 = vsel %vm308, %v1728, %v1630
    %1731 = vmatprep.subr.mxu0 %v273
    %1732 = vmatpush1.msra.mxu0 %v272
    %1733 = vmatprep.subr.mxu0 %v275
    %1734 = vmatpush1.msra.mxu0 %v274
    %1735 = vmatprep.subr.mxu0 %v277
    %1736 = vmatpush1.msra.mxu0 %v276
    %1737 = vmatprep.subr.mxu0 %v279
    %1738 = vmatpush1.msra.mxu0 %v278
    %1739 = vmatprep.subr.mxu0 %v281
    %1740 = vmatpush1.msra.mxu0 %v280
    %1741 = vmatprep.subr.mxu0 %v283
    %1742 = vmatpush1.msra.mxu0 %v282
    %1743 = vmatprep.subr.mxu0 %v285
    %1744 = vmatpush1.msra.mxu0 %v284
    %1745 = vmatprep.subr.mxu0 %v287
    %1746 = vmatpush1.msra.mxu0 %v286
    %1747 = vmatprep.subr.mxu0 %v289
    %1748 = vmatpush1.msra.mxu0 %v288
    %1749 = vmatprep.subr.mxu0 %v291
    %1750 = vmatpush1.msra.mxu0 %v290
    %1751 = vmatprep.subr.mxu0 %v293
    %1752 = vmatpush1.msra.mxu0 %v292
    %1753 = vmatprep.subr.mxu0 %v295
    %1754 = vmatpush1.msra.mxu0 %v294
    %1755 = vmatprep.subr.mxu0 %v297
    %1756 = vmatpush1.msra.mxu0 %v296
    %1757 = vmatprep.subr.mxu0 %v299
    %1758 = vmatpush1.msra.mxu0 %v298
    %1759 = vmatprep.subr.mxu0 %v301
    %1760 = vmatpush1.msra.mxu0 %v300
    %1761 = vmatprep.subr.mxu0 %v303
    %1762 = vmatpush1.msra.mxu0 %v302
    %1763 = vmatprep.subr.mxu0 0.0
    %1764 = vmatpush1.msra.mxu0 0.0
    %1765 = vmatprep.subr.mxu0 0.0
    %1766 = vmatpush1.msra.mxu0 0.0
    %1767 = vmatprep.subr.mxu0 0.0
    %1768 = vmatpush1.msra.mxu0 0.0
    %1769 = vmatprep.subr.mxu0 0.0
    %1770 = vmatpush1.msra.mxu0 0.0
    %1771 = vmatprep.subr.mxu0 0.0
    %1772 = vmatpush1.msra.mxu0 0.0
    %1773 = vmatprep.subr.mxu0 0.0
    %1774 = vmatpush1.msra.mxu0 0.0
    %1775 = vmatprep.subr.mxu0 0.0
    %1776 = vmatpush1.msra.mxu0 0.0
    %1777 = vmatprep.subr.mxu0 0.0
    %1778 = vmatpush1.msra.mxu0 0.0
    %1779 = vmatprep.subr.mxu0 0.0
    %1780 = vmatpush1.msra.mxu0 0.0
    %1781 = vmatprep.subr.mxu0 0.0
    %1782 = vmatpush1.msra.mxu0 0.0
    %1783 = vmatprep.subr.mxu0 0.0
    %1784 = vmatpush1.msra.mxu0 0.0
    %1785 = vmatprep.subr.mxu0 0.0
    %1786 = vmatpush1.msra.mxu0 0.0
    %1787 = vmatprep.subr.mxu0 0.0
    %1788 = vmatpush1.msra.mxu0 0.0
    %1789 = vmatprep.subr.mxu0 0.0
    %1790 = vmatpush1.msra.mxu0 0.0
    %1791 = vmatprep.subr.mxu0 0.0
    %1792 = vmatpush1.msra.mxu0 0.0
    %1793 = vmatprep.subr.mxu0 0.0
    %1794 = vmatpush1.msra.mxu0 0.0
    %1795 = vmatprep.mubr.f32.mxu0 0.0
    %1796 = vmatmul.mubr.f32.gmra.mrb[0].mxu0 %v1730
    %v1797 = vpop.f32.mrb[0].mxu0
    %v1798 = vadd.f32 %v304, %v1797
    %v1799 = vpop.f32.mrb[0].mxu0
    %v1800 = vadd.f32 %v305, %v1799
    %1801 = vdwg.mxu0
    %v1802 = vmul.f32 %v1798, 0.5
    %v1803 = vtanh.pop %v1802
    %v1804 = vmul.f32 %v1803, 0.5
    %v1805 = vadd.f32 %v1804, 0.5
    %v1806 = vtanh.pop %v1800
    %v1807 = vmul.f32 %v1800, 0.5
    %v1808 = vtanh.pop %v1807
    %v1809 = vmul.f32 %v1808, 0.5
    %v1810 = vadd.f32 %v1809, 0.5
    %v1811 = vmul.f32 %v1805, %v1628
    %v1812 = vmul.f32 %v1805, %v1806
    %1814 = vrot.lane.b32.xlu0 %v1812, 64
    %v1815 = vpop.permute.xlu0 %1814
    %v1817 = vadd.f32 %v1811, %v1815
    %v1818 = vtanh.pop %v1817
    %v1819 = vmul.f32 %v1810, %v1818
    %v1820 = vld [vmem:[%s6] sm:$0xff]
    %v1821 = vld [vmem:[%s6 + $0x8] sm:$0xff]
    %v1822 = vld [vmem:[%s6 + $0x10] sm:$0xff]
    %v1823 = vld [vmem:[%s6 + $0x18] sm:$0xff]
    %v1824 = vld [vmem:[%s6 + $0x20] sm:$0xff]
    %v1825 = vld [vmem:[%s6 + $0x28] sm:$0xff]
    %v1826 = vld [vmem:[%s6 + $0x30] sm:$0xff]
    %v1827 = vld [vmem:[%s6 + $0x38] sm:$0xff]
    %v1828 = vld [vmem:[%s7] sm:$0x1]
    %v1830 = vlaneseq
    %v1831 = vshrl.u32 %v1830, 7
    %v1832 = vsub.s32 0, %v1831
    %v1833 = vrot.slane %v1828, %v1832
    %1836 = vrot.lane.b32.xlu0 %v1819, 64
    %v1837 = vpop.permute.xlu0 %1836
    %v1838 = vsel %vm308, %v1837, 0
    %1840 = vmatprep.subr.mxu0 0.0
    %1841 = vmatpush1.msra.mxu0 %v1820
    %1842 = vmatprep.subr.mxu0 0.0
    %1843 = vmatpush1.msra.mxu0 %v1821
    %1844 = vmatprep.subr.mxu0 0.0
    %1845 = vmatpush1.msra.mxu0 %v1822
    %1846 = vmatprep.subr.mxu0 0.0
    %1847 = vmatpush1.msra.mxu0 %v1823
    %1848 = vmatprep.subr.mxu0 0.0
    %1849 = vmatpush1.msra.mxu0 %v1824
    %1850 = vmatprep.subr.mxu0 0.0
    %1851 = vmatpush1.msra.mxu0 %v1825
    %1852 = vmatprep.subr.mxu0 0.0
    %1853 = vmatpush1.msra.mxu0 %v1826
    %1854 = vmatprep.subr.mxu0 0.0
    %1855 = vmatpush1.msra.mxu0 %v1827
    %1856 = vmatprep.subr.mxu0 0.0
    %1857 = vmatpush1.msra.mxu0 0.0
    %1858 = vmatprep.subr.mxu0 0.0
    %1859 = vmatpush1.msra.mxu0 0.0
    %1860 = vmatprep.subr.mxu0 0.0
    %1861 = vmatpush1.msra.mxu0 0.0
    %1862 = vmatprep.subr.mxu0 0.0
    %1863 = vmatpush1.msra.mxu0 0.0
    %1864 = vmatprep.subr.mxu0 0.0
    %1865 = vmatpush1.msra.mxu0 0.0
    %1866 = vmatprep.subr.mxu0 0.0
    %1867 = vmatpush1.msra.mxu0 0.0
    %1868 = vmatprep.subr.mxu0 0.0
    %1869 = vmatpush1.msra.mxu0 0.0
    %1870 = vmatprep.subr.mxu0 0.0
    %1871 = vmatpush1.msra.mxu0 0.0
    %1872 = vmatprep.subr.mxu0 0.0
    %1873 = vmatpush1.msra.mxu0 0.0
    %1874 = vmatprep.subr.mxu0 0.0
    %1875 = vmatpush1.msra.mxu0 0.0
    %1876 = vmatprep.subr.mxu0 0.0
    %1877 = vmatpush1.msra.mxu0 0.0
    %1878 = vmatprep.subr.mxu0 0.0
    %1879 = vmatpush1.msra.mxu0 0.0
    %1880 = vmatprep.subr.mxu0 0.0
    %1881 = vmatpush1.msra.mxu0 0.0
    %1882 = vmatprep.subr.mxu0 0.0
    %1883 = vmatpush1.msra.mxu0 0.0
    %1884 = vmatprep.subr.mxu0 0.0
    %1885 = vmatpush1.msra.mxu0 0.0
    %1886 = vmatprep.subr.mxu0 0.0
    %1887 = vmatpush1.msra.mxu0 0.0
    %1888 = vmatprep.subr.mxu0 0.0
    %1889 = vmatpush1.msra.mxu0 0.0
    %1890 = vmatprep.subr.mxu0 0.0
    %1891 = vmatpush1.msra.mxu0 0.0
    %1892 = vmatprep.subr.mxu0 0.0
    %1893 = vmatpush1.msra.mxu0 0.0
    %1894 = vmatprep.subr.mxu0 0.0
    %1895 = vmatpush1.msra.mxu0 0.0
    %1896 = vmatprep.subr.mxu0 0.0
    %1897 = vmatpush1.msra.mxu0 0.0
    %1898 = vmatprep.subr.mxu0 0.0
    %1899 = vmatpush1.msra.mxu0 0.0
    %1900 = vmatprep.subr.mxu0 0.0
    %1901 = vmatpush1.msra.mxu0 0.0
    %1902 = vmatprep.subr.mxu0 0.0
    %1903 = vmatpush1.msra.mxu0 0.0
    %1904 = vmatprep.mubr.f32.mxu0 0.0
    %1905 = vmatmul.mubr.f32.gmra.mrb[0].mxu0 %v1838
    %v1906 = vpop.f32.mrb[0].mxu0
    %v1907 = vadd.f32 %v1833, %v1906
    %v1908 = vpop.f32.mrb[0].mxu0
    %1909 = vdwg.mxu0
    %vm1910 = vcmask 97280
    %1911 = vst.msk [vmem:[#allocation8] sm:$0xff] %vm1910, %v1907
    // Predicated region
    $region42: #{tpu_custom_call.1} parent=1 // pred_check
      _
    $region43: #{tpu_custom_call.1} parent=1 // pred_check_branch
      %1913 = sbr.rel (0) target = $region45
    $region44: #{tpu_custom_call.1} parent=1 // pred_region
      %s1915 = ssub.s32 128, 128
      %1916 = vsyncadd [#allocation5], %s1915
      %s1918 = sshll.u32 [#allocation8], 4
      %s1919 = int_to_ptr.vmem [resolvable:$true] %s1918
      %1921 = dma.vmem_to_hbm [thread:$0]  %s1919, 128, %s8, [#allocation5]
    $region45: #{tpu_custom_call.1} parent=1 // pred_fallthru
      _
    // Predicated region
    $region46: #{tpu_custom_call.1} parent=1 // pred_check
      _
    $region47: #{tpu_custom_call.1} parent=1 // pred_check_branch
      %1923 = sbr.rel (0) target = $region49
    $region48: #{tpu_custom_call.1} parent=1 // pred_region
      %1924 = dma.done [#allocation5], 128
    $region49: #{tpu_custom_call.1} parent=1 // pred_fallthru
      _
    %1925 = vsyncpa [#allocation4], 1
    %1926 = vsyncpa [#allocation7], 1
    %1927 = vsyncpa [#allocation5], 1

</llo_original>
